<compile_context>
chip_gen: v7x
topology: tpu7x:2x2x1
jax: 0.10.0
libtpu: 0.0.40
codegen_flags: <defaults>
</compile_context>

<pallas_src>
import functools
import math

import jax
import jax.numpy as jnp
from jax.experimental import pallas as pl
from jax.experimental.pallas import tpu as pltpu

# MXU operand dtype (float32 accumulation is kept everywhere).
MXU_DTYPE = jnp.bfloat16


def _pick_tile(m):
    """Largest power-of-two row tile (<=512) that divides m, else m itself."""
    for t in (512, 256, 128, 64, 32, 16, 8):
        if m % t == 0:
            return t
    return m


# ----------------------------------------------------------------------------
# Kernel 1: fused multi-output projection  y = act(x @ [w0|w1|...] + b)
#           (used for fused QKV, fused KV, single projections and FFN-1)
# ----------------------------------------------------------------------------

def _proj_kernel(x_ref, w_ref, b_ref, *o_refs, activation):
    y = jnp.dot(x_ref[...].astype(MXU_DTYPE), w_ref[...].astype(MXU_DTYPE),
                preferred_element_type=jnp.float32)
    y = y + b_ref[...].astype(jnp.float32)
    if activation == "relu":
        y = jnp.maximum(y, 0.0)
    off = 0
    for o_ref in o_refs:
        n = o_ref.shape[-1]
        o_ref[...] = y[:, off:off + n].astype(o_ref.dtype)
        off += n


def fused_projection(x, weights, biases, activation=None):
    """x: (M, K); weights[i]: (K, Ni); biases[i]: (Ni,) -> tuple of (M, Ni)."""
    M, K = x.shape
    ns = [w.shape[1] for w in weights]
    N = sum(ns)
    w_cat = weights[0] if len(weights) == 1 else jnp.concatenate(weights, axis=1)
    b_cat = biases[0] if len(biases) == 1 else jnp.concatenate(biases, axis=0)
    tm = _pick_tile(M)
    outs = pl.pallas_call(
        functools.partial(_proj_kernel, activation=activation),
        out_shape=tuple(jax.ShapeDtypeStruct((M, n), x.dtype) for n in ns),
        grid=(M // tm,),
        in_specs=[
            pl.BlockSpec((tm, K), lambda i: (i, 0)),
            pl.BlockSpec((K, N), lambda i: (0, 0)),
            pl.BlockSpec((1, N), lambda i: (0, 0)),
        ],
        out_specs=tuple(pl.BlockSpec((tm, n), lambda i: (i, 0)) for n in ns),
        compiler_params=pltpu.CompilerParams(dimension_semantics=("parallel",)),
    )(x, w_cat, b_cat.reshape(1, N))
    if not isinstance(outs, (list, tuple)):
        outs = (outs,)
    return tuple(outs)


# ----------------------------------------------------------------------------
# Kernel 2: matmul + bias + residual + LayerNorm (fused epilogue)
# ----------------------------------------------------------------------------

def _matmul_res_ln_kernel(x_ref, w_ref, b_ref, res_ref, g_ref, beta_ref, o_ref,
                          *, eps):
    y = jnp.dot(x_ref[...].astype(MXU_DTYPE), w_ref[...].astype(MXU_DTYPE),
                preferred_element_type=jnp.float32)
    y = y + b_ref[...].astype(jnp.float32) + res_ref[...].astype(jnp.float32)
    mu = jnp.mean(y, axis=-1, keepdims=True)
    var = jnp.mean((y - mu) ** 2, axis=-1, keepdims=True)
    yn = (y - mu) * jax.lax.rsqrt(var + eps)
    o_ref[...] = (yn * g_ref[...].astype(jnp.float32)
                  + beta_ref[...].astype(jnp.float32)).astype(o_ref.dtype)


def linear_res_ln(x, w, b, res, gamma, beta, eps=1e-5):
    """LayerNorm(res + x @ w + b) over the last dim. x:(M,K), w:(K,N), res:(M,N)."""
    M, K = x.shape
    N = w.shape[1]
    tm = _pick_tile(M)
    return pl.pallas_call(
        functools.partial(_matmul_res_ln_kernel, eps=eps),
        out_shape=jax.ShapeDtypeStruct((M, N), res.dtype),
        grid=(M // tm,),
        in_specs=[
            pl.BlockSpec((tm, K), lambda i: (i, 0)),
            pl.BlockSpec((K, N), lambda i: (0, 0)),
            pl.BlockSpec((1, N), lambda i: (0, 0)),
            pl.BlockSpec((tm, N), lambda i: (i, 0)),
            pl.BlockSpec((1, N), lambda i: (0, 0)),
            pl.BlockSpec((1, N), lambda i: (0, 0)),
        ],
        out_specs=pl.BlockSpec((tm, N), lambda i: (i, 0)),
        compiler_params=pltpu.CompilerParams(dimension_semantics=("parallel",)),
    )(x, w, b.reshape(1, N), res, gamma.reshape(1, N), beta.reshape(1, N))


# ----------------------------------------------------------------------------
# Kernel 3: multi-head attention, one batch element per grid step,
#           lane-dense (Sq, D) output, mask read once per batch (no repeat).
# ----------------------------------------------------------------------------

def _mha_kernel(q_ref, k_ref, v_ref, m_ref, o_ref, *, h, scale):
    D = q_ref.shape[-1]
    dh = D // h
    q = q_ref[0].astype(jnp.float32) * scale        # fold 1/sqrt(dh) into q
    k = k_ref[0]
    v = v_ref[0]
    m = m_ref[0].astype(jnp.float32)                # additive mask (Sq, Sk)
    outs = []
    for hh in range(h):                             # static unroll over heads
        sl = slice(hh * dh, (hh + 1) * dh)
        qh = q[:, sl].astype(MXU_DTYPE)
        kh = k[:, sl].astype(MXU_DTYPE)
        vh = v[:, sl].astype(MXU_DTYPE)
        s = jnp.dot(qh, kh.T, preferred_element_type=jnp.float32) + m
        s = s - jnp.max(s, axis=-1, keepdims=True)
        p = jnp.exp(s)
        p = p * pl.reciprocal(jnp.sum(p, axis=-1, keepdims=True), approx=True)
        outs.append(jnp.dot(p.astype(MXU_DTYPE), vh,
                            preferred_element_type=jnp.float32))
    o_ref[0] = jnp.concatenate(outs, axis=-1).astype(o_ref.dtype)


def multi_head_attention_core(q, k, v, mask, h):
    """q: (B, Sq, D), k/v: (B, Sk, D), mask: (B, Sq, Sk) additive -> (B, Sq, D)."""
    B, Sq, D = q.shape
    Sk = k.shape[1]
    scale = 1.0 / math.sqrt(D // h)
    return pl.pallas_call(
        functools.partial(_mha_kernel, h=h, scale=scale),
        out_shape=jax.ShapeDtypeStruct((B, Sq, D), q.dtype),
        grid=(B,),
        in_specs=[
            pl.BlockSpec((1, Sq, D), lambda b: (b, 0, 0)),
            pl.BlockSpec((1, Sk, D), lambda b: (b, 0, 0)),
            pl.BlockSpec((1, Sk, D), lambda b: (b, 0, 0)),
            pl.BlockSpec((1, Sq, Sk), lambda b: (b, 0, 0)),
        ],
        out_specs=pl.BlockSpec((1, Sq, D), lambda b: (b, 0, 0)),
        compiler_params=pltpu.CompilerParams(dimension_semantics=("parallel",)),
    )(q, k, v, mask)


# ----------------------------------------------------------------------------
# Decoder layer / stack (glue in plain JAX; hot path in Pallas kernels above)
# ----------------------------------------------------------------------------

def decoder_layer(x, mem, mask_x, mask_mem, p, h):
    """x: (B, Sq, D), mem: (B, Sk, D). Activations kept 2-D between kernels."""
    B, Sq, D = x.shape
    Sk = mem.shape[1]
    x2 = x.reshape(B * Sq, D)
    mem2 = mem.reshape(B * Sk, D)

    # --- masked self-attention (fused QKV) + fused residual + LN ------------
    ap = p["self_attn"]
    q2, k2, v2 = fused_projection(
        x2, [ap["wq"], ap["wk"], ap["wv"]], [ap["bq"], ap["bk"], ap["bv"]])
    o = multi_head_attention_core(
        q2.reshape(B, Sq, D), k2.reshape(B, Sq, D), v2.reshape(B, Sq, D),
        mask_x, h)
    x2 = linear_res_ln(o.reshape(B * Sq, D), ap["wo"], ap["bo"],
                       x2, p["ln1_g"], p["ln1_b"])

    # --- cross-attention over encoder memory (fused KV) ---------------------
    ap = p["cross_attn"]
    q2 = fused_projection(x2, [ap["wq"]], [ap["bq"]])[0]
    k2, v2 = fused_projection(mem2, [ap["wk"], ap["wv"]], [ap["bk"], ap["bv"]])
    o = multi_head_attention_core(
        q2.reshape(B, Sq, D), k2.reshape(B, Sk, D), v2.reshape(B, Sk, D),
        mask_mem, h)
    x2 = linear_res_ln(o.reshape(B * Sq, D), ap["wo"], ap["bo"],
                       x2, p["ln2_g"], p["ln2_b"])

    # --- position-wise feed-forward, second matmul fused with residual + LN -
    f2 = fused_projection(x2, [p["w1"]], [p["b1"]], activation="relu")[0]
    x2 = linear_res_ln(f2, p["w2"], p["b2"], x2, p["ln3_g"], p["ln3_b"])

    return x2.reshape(B, Sq, D)


@functools.partial(jax.jit, static_argnames=("h",))
def _decoder_stack(x, mem, mask_x, mask_mem, params, h):
    out = x
    for p in params["layers"]:
        out = decoder_layer(out, mem, mask_x, mask_mem, p, h)
    return out


def decoder_forward(x, mem, mask_x, mask_mem, params, h):
    """Mirrors Decoder.forward: computes the stack, returns x (as the reference)."""
    out = _decoder_stack(x, mem, mask_x, mask_mem, params, h=h)
    jax.block_until_ready(out)   # the stack genuinely runs (reference discards it)
    return x                     # faithful to the reference `return x`


# ----------------------------------------------------------------------------
# Deterministic parameter construction
# ----------------------------------------------------------------------------

def init_params(key, dim_model, dim_ff, h, n):
    def dense(k, fan_in, fan_out):
        kw, kb = jax.random.split(k)
        lim = 1.0 / math.sqrt(fan_in)
        w = jax.random.uniform(kw, (fan_in, fan_out), jnp.float32, -lim, lim)
        b = jax.random.uniform(kb, (fan_out,), jnp.float32, -lim, lim)
        return w, b

    def attn_params(k):
        ks = jax.random.split(k, 4)
        wq, bq = dense(ks[0], dim_model, dim_model)
        wk, bk = dense(ks[1], dim_model, dim_model)
        wv, bv = dense(ks[2], dim_model, dim_model)
        wo, bo = dense(ks[3], dim_model, dim_model)
        return {"wq": wq, "bq": bq, "wk": wk, "bk": bk,
                "wv": wv, "bv": bv, "wo": wo, "bo": bo}

    # deepcopy(decoder_layer) in the reference -> all layers share identical
    # initial values (inference-only here, so value-sharing is equivalent).
    kl = jax.random.split(key, 4)
    w1, b1 = dense(kl[0], dim_model, dim_ff)
    w2, b2 = dense(kl[1], dim_ff, dim_model)
    layer = {
        "self_attn": attn_params(kl[2]),
        "cross_attn": attn_params(kl[3]),
        "w1": w1, "b1": b1, "w2": w2, "b2": b2,
        "ln1_g": jnp.ones((dim_model,), jnp.float32),
        "ln1_b": jnp.zeros((dim_model,), jnp.float32),
        "ln2_g": jnp.ones((dim_model,), jnp.float32),
        "ln2_b": jnp.zeros((dim_model,), jnp.float32),
        "ln3_g": jnp.ones((dim_model,), jnp.float32),
        "ln3_b": jnp.zeros((dim_model,), jnp.float32),
    }
    return {"layers": [dict(layer) for _ in range(n)]}


# ----------------------------------------------------------------------------
# Main
# ----------------------------------------------------------------------------

if __name__ == "__main__":
    dim_model, dim_ff, h, prob_dropout, n = 32, 64, 4, 0.1, 2
    batch, seq_x, seq_mem = 2, 8, 8

    key = jax.random.PRNGKey(0)
    kx, km, kp = jax.random.split(key, 3)

    x = jax.random.normal(kx, (batch, seq_x, dim_model), jnp.float32)
    mem = jax.random.normal(km, (batch, seq_mem, dim_model), jnp.float32)

    # causal additive mask for self-attention, zero (no-op) mask for cross-attn
    causal = jnp.where(
        jnp.tril(jnp.ones((seq_x, seq_x), jnp.bool_)), 0.0, -1e9
    ).astype(jnp.float32)
    mask_x = jnp.broadcast_to(causal, (batch, seq_x, seq_x))
    mask_mem = jnp.zeros((batch, seq_x, seq_mem), jnp.float32)

    params = init_params(kp, dim_model, dim_ff, h, n)

    y = decoder_forward(x, mem, mask_x, mask_mem, params, h)
    y = jax.block_until_ready(y)

    assert y.shape == x.shape and y.dtype == x.dtype
    print("KERNEL_OK")
</pallas_src>

<mosaic_0001>
module attributes {stable_mosaic.version = 11 : i64} {
  func.func @_proj_kernel(%arg0: i32, %arg1: memref<16x32xf32, #tpu.memory_space<vmem>>, %arg2: memref<32x96xf32, #tpu.memory_space<vmem>>, %arg3: memref<1x96xf32, #tpu.memory_space<vmem>>, %arg4: memref<16x32xf32, #tpu.memory_space<vmem>>, %arg5: memref<16x32xf32, #tpu.memory_space<vmem>>, %arg6: memref<16x32xf32, #tpu.memory_space<vmem>>) attributes {dimension_semantics = [#tpu.dimension_semantics<parallel>], iteration_bounds = array<i64: 1>, scalar_prefetch = 0 : i64, scratch_operands = 0 : i64, tpu.core_type = #tpu.core_type<tc>, window_params = [{transform_indices = @transform_0, window_bounds = array<i64: 16, 32>}, {pipeline_mode = #tpu.pipeline_mode<synchronous>, transform_indices = @transform_1, window_bounds = array<i64: 32, 96>}, {pipeline_mode = #tpu.pipeline_mode<synchronous>, transform_indices = @transform_2, window_bounds = array<i64: 1, 96>}, {transform_indices = @transform_3, window_bounds = array<i64: 16, 32>}, {transform_indices = @transform_4, window_bounds = array<i64: 16, 32>}, {transform_indices = @transform_5, window_bounds = array<i64: 16, 32>}]} {
    %c0 = arith.constant 0 : index
    %c0_0 = arith.constant 0 : index
    %0 = vector.load %arg1[%c0, %c0_0] : memref<16x32xf32, #tpu.memory_space<vmem>>, vector<16x32xf32>
    %1 = arith.truncf %0 : vector<16x32xf32> to vector<16x32xbf16>
    %c0_1 = arith.constant 0 : index
    %c0_2 = arith.constant 0 : index
    %2 = vector.load %arg2[%c0_1, %c0_2] : memref<32x96xf32, #tpu.memory_space<vmem>>, vector<32x96xf32>
    %3 = arith.truncf %2 : vector<32x96xf32> to vector<32x96xbf16>
    %cst = arith.constant dense<0.000000e+00> : vector<16x96xf32>
    %4 = tpu.matmul %1, %3, %cst {dimension_numbers = #tpu.dot_dimension_numbers<[1], [0], [0], [1], [0, 0, 1, 1], [], []>} : vector<16x32xbf16>, vector<32x96xbf16>, vector<16x96xf32> -> vector<16x96xf32>
    %c0_3 = arith.constant 0 : index
    %c0_4 = arith.constant 0 : index
    %5 = vector.load %arg3[%c0_3, %c0_4] : memref<1x96xf32, #tpu.memory_space<vmem>>, vector<1x96xf32>
    %6 = vector.broadcast %5 : vector<1x96xf32> to vector<16x96xf32>
    %7 = arith.addf %4, %6 : vector<16x96xf32>
    %8 = vector.extract_strided_slice %7 {offsets = [0, 0], sizes = [16, 32], strides = [1, 1]} : vector<16x96xf32> to vector<16x32xf32>
    %c0_5 = arith.constant 0 : index
    %c0_6 = arith.constant 0 : index
    %9 = vector.load %arg4[%c0_5, %c0_6] : memref<16x32xf32, #tpu.memory_space<vmem>>, vector<16x32xf32>
    tpu.vector_store %arg4[%c0_5, %c0_6], %8 {strides = array<i32>} : memref<16x32xf32, #tpu.memory_space<vmem>>, vector<16x32xf32>,
    %10 = vector.extract_strided_slice %7 {offsets = [0, 32], sizes = [16, 32], strides = [1, 1]} : vector<16x96xf32> to vector<16x32xf32>
    %c0_7 = arith.constant 0 : index
    %c0_8 = arith.constant 0 : index
    %11 = vector.load %arg5[%c0_7, %c0_8] : memref<16x32xf32, #tpu.memory_space<vmem>>, vector<16x32xf32>
    tpu.vector_store %arg5[%c0_7, %c0_8], %10 {strides = array<i32>} : memref<16x32xf32, #tpu.memory_space<vmem>>, vector<16x32xf32>,
    %12 = vector.extract_strided_slice %7 {offsets = [0, 64], sizes = [16, 32], strides = [1, 1]} : vector<16x96xf32> to vector<16x32xf32>
    %c0_9 = arith.constant 0 : index
    %c0_10 = arith.constant 0 : index
    %13 = vector.load %arg6[%c0_9, %c0_10] : memref<16x32xf32, #tpu.memory_space<vmem>>, vector<16x32xf32>
    tpu.vector_store %arg6[%c0_9, %c0_10], %12 {strides = array<i32>} : memref<16x32xf32, #tpu.memory_space<vmem>>, vector<16x32xf32>,
    return
  }
  func.func @transform_0(%arg0: i32) -> (i32, i32) {
    %c0_i32 = arith.constant 0 : i32
    %c0_i32_0 = arith.constant 0 : i32
    return %arg0, %c0_i32 : i32, i32
  }
  func.func @transform_1(%arg0: i32) -> (i32, i32) {
    %c0_i32 = arith.constant 0 : i32
    %c0_i32_0 = arith.constant 0 : i32
    %c0_i32_1 = arith.constant 0 : i32
    return %c0_i32, %c0_i32_0 : i32, i32
  }
  func.func @transform_2(%arg0: i32) -> (i32, i32) {
    %c0_i32 = arith.constant 0 : i32
    %c0_i32_0 = arith.constant 0 : i32
    %c0_i32_1 = arith.constant 0 : i32
    return %c0_i32, %c0_i32_0 : i32, i32
  }
  func.func @transform_3(%arg0: i32) -> (i32, i32) {
    %c0_i32 = arith.constant 0 : i32
    %c0_i32_0 = arith.constant 0 : i32
    return %arg0, %c0_i32 : i32, i32
  }
  func.func @transform_4(%arg0: i32) -> (i32, i32) {
    %c0_i32 = arith.constant 0 : i32
    %c0_i32_0 = arith.constant 0 : i32
    return %arg0, %c0_i32 : i32, i32
  }
  func.func @transform_5(%arg0: i32) -> (i32, i32) {
    %c0_i32 = arith.constant 0 : i32
    %c0_i32_0 = arith.constant 0 : i32
    return %arg0, %c0_i32 : i32, i32
  }
}

module attributes {stable_mosaic.version = 11 : i64} {
  func.func @_mha_kernel(%arg0: i32, %arg1: memref<1x8x32xf32, #tpu.memory_space<vmem>>, %arg2: memref<1x8x32xf32, #tpu.memory_space<vmem>>, %arg3: memref<1x8x32xf32, #tpu.memory_space<vmem>>, %arg4: memref<1x8x8xf32, #tpu.memory_space<vmem>>, %arg5: memref<1x8x32xf32, #tpu.memory_space<vmem>>) attributes {dimension_semantics = [#tpu.dimension_semantics<parallel>], iteration_bounds = array<i64: 2>, scalar_prefetch = 0 : i64, scratch_operands = 0 : i64, tpu.core_type = #tpu.core_type<tc>, window_params = [{transform_indices = @transform_0, window_bounds = array<i64: 1, 8, 32>}, {transform_indices = @transform_1, window_bounds = array<i64: 1, 8, 32>}, {transform_indices = @transform_2, window_bounds = array<i64: 1, 8, 32>}, {transform_indices = @transform_3, window_bounds = array<i64: 1, 8, 8>}, {transform_indices = @transform_4, window_bounds = array<i64: 1, 8, 32>}]} {
    %c0 = arith.constant 0 : index
    %c0_0 = arith.constant 0 : index
    %c0_1 = arith.constant 0 : index
    %0 = vector.load %arg1[%c0, %c0_0, %c0_1] : memref<1x8x32xf32, #tpu.memory_space<vmem>>, vector<1x8x32xf32>
    %1 = vector.shape_cast %0 : vector<1x8x32xf32> to vector<8x32xf32>
    %cst = arith.constant 0.353553385 : f32
    %2 = vector.broadcast %cst : f32 to vector<8x32xf32>
    %3 = arith.mulf %1, %2 : vector<8x32xf32>
    %c0_2 = arith.constant 0 : index
    %c0_3 = arith.constant 0 : index
    %c0_4 = arith.constant 0 : index
    %4 = vector.load %arg2[%c0_2, %c0_3, %c0_4] : memref<1x8x32xf32, #tpu.memory_space<vmem>>, vector<1x8x32xf32>
    %5 = vector.shape_cast %4 : vector<1x8x32xf32> to vector<8x32xf32>
    %c0_5 = arith.constant 0 : index
    %c0_6 = arith.constant 0 : index
    %c0_7 = arith.constant 0 : index
    %6 = vector.load %arg3[%c0_5, %c0_6, %c0_7] : memref<1x8x32xf32, #tpu.memory_space<vmem>>, vector<1x8x32xf32>
    %7 = vector.shape_cast %6 : vector<1x8x32xf32> to vector<8x32xf32>
    %c0_8 = arith.constant 0 : index
    %c0_9 = arith.constant 0 : index
    %c0_10 = arith.constant 0 : index
    %8 = vector.load %arg4[%c0_8, %c0_9, %c0_10] : memref<1x8x8xf32, #tpu.memory_space<vmem>>, vector<1x8x8xf32>
    %9 = vector.shape_cast %8 : vector<1x8x8xf32> to vector<8x8xf32>
    %10 = vector.extract_strided_slice %3 {offsets = [0, 0], sizes = [8, 8], strides = [1, 1]} : vector<8x32xf32> to vector<8x8xf32>
    %11 = arith.truncf %10 : vector<8x8xf32> to vector<8x8xbf16>
    %12 = vector.extract_strided_slice %5 {offsets = [0, 0], sizes = [8, 8], strides = [1, 1]} : vector<8x32xf32> to vector<8x8xf32>
    %13 = arith.truncf %12 : vector<8x8xf32> to vector<8x8xbf16>
    %14 = vector.extract_strided_slice %7 {offsets = [0, 0], sizes = [8, 8], strides = [1, 1]} : vector<8x32xf32> to vector<8x8xf32>
    %15 = arith.truncf %14 : vector<8x8xf32> to vector<8x8xbf16>
    %16 = tpu.transpose %13, [1, 0] : vector<8x8xbf16> -> vector<8x8xbf16>
    %cst_11 = arith.constant dense<0.000000e+00> : vector<8x8xf32>
    %17 = tpu.matmul %11, %16, %cst_11 {dimension_numbers = #tpu.dot_dimension_numbers<[1], [0], [0], [1], [0, 0, 1, 1], [], []>} : vector<8x8xbf16>, vector<8x8xbf16>, vector<8x8xf32> -> vector<8x8xf32>
    %18 = arith.addf %17, %9 : vector<8x8xf32>
    %cst_12 = arith.constant dense<0xFF800000> : vector<8xf32>
    %19 = vector.multi_reduction <maximumf>, %18, %cst_12 [1] : vector<8x8xf32> to vector<8xf32>
    %20 = vector.shape_cast %19 : vector<8xf32> to vector<8x1xf32>
    %21 = vector.broadcast %20 : vector<8x1xf32> to vector<8x8xf32>
    %22 = arith.subf %18, %21 : vector<8x8xf32>
    %23 = math.exp %22 : vector<8x8xf32>
    %cst_13 = arith.constant dense<0.000000e+00> : vector<8xf32>
    %24 = vector.multi_reduction <add>, %23, %cst_13 [1] : vector<8x8xf32> to vector<8xf32>
    %25 = vector.shape_cast %24 : vector<8xf32> to vector<8x1xf32>
    %26 = tpu.reciprocal %25 {approx = true} : vector<8x1xf32> -> vector<8x1xf32>
    %27 = vector.broadcast %26 : vector<8x1xf32> to vector<8x8xf32>
    %28 = arith.mulf %23, %27 : vector<8x8xf32>
    %29 = arith.truncf %28 : vector<8x8xf32> to vector<8x8xbf16>
    %cst_14 = arith.constant dense<0.000000e+00> : vector<8x8xf32>
    %30 = tpu.matmul %29, %15, %cst_14 {dimension_numbers = #tpu.dot_dimension_numbers<[1], [0], [0], [1], [0, 0, 1, 1], [], []>} : vector<8x8xbf16>, vector<8x8xbf16>, vector<8x8xf32> -> vector<8x8xf32>
    %31 = vector.extract_strided_slice %3 {offsets = [0, 8], sizes = [8, 8], strides = [1, 1]} : vector<8x32xf32> to vector<8x8xf32>
    %32 = arith.truncf %31 : vector<8x8xf32> to vector<8x8xbf16>
    %33 = vector.extract_strided_slice %5 {offsets = [0, 8], sizes = [8, 8], strides = [1, 1]} : vector<8x32xf32> to vector<8x8xf32>
    %34 = arith.truncf %33 : vector<8x8xf32> to vector<8x8xbf16>
    %35 = vector.extract_strided_slice %7 {offsets = [0, 8], sizes = [8, 8], strides = [1, 1]} : vector<8x32xf32> to vector<8x8xf32>
    %36 = arith.truncf %35 : vector<8x8xf32> to vector<8x8xbf16>
    %37 = tpu.transpose %34, [1, 0] : vector<8x8xbf16> -> vector<8x8xbf16>
    %cst_15 = arith.constant dense<0.000000e+00> : vector<8x8xf32>
    %38 = tpu.matmul %32, %37, %cst_15 {dimension_numbers = #tpu.dot_dimension_numbers<[1], [0], [0], [1], [0, 0, 1, 1], [], []>} : vector<8x8xbf16>, vector<8x8xbf16>, vector<8x8xf32> -> vector<8x8xf32>
    %39 = arith.addf %38, %9 : vector<8x8xf32>
    %cst_16 = arith.constant dense<0xFF800000> : vector<8xf32>
    %40 = vector.multi_reduction <maximumf>, %39, %cst_16 [1] : vector<8x8xf32> to vector<8xf32>
    %41 = vector.shape_cast %40 : vector<8xf32> to vector<8x1xf32>
    %42 = vector.broadcast %41 : vector<8x1xf32> to vector<8x8xf32>
    %43 = arith.subf %39, %42 : vector<8x8xf32>
    %44 = math.exp %43 : vector<8x8xf32>
    %cst_17 = arith.constant dense<0.000000e+00> : vector<8xf32>
    %45 = vector.multi_reduction <add>, %44, %cst_17 [1] : vector<8x8xf32> to vector<8xf32>
    %46 = vector.shape_cast %45 : vector<8xf32> to vector<8x1xf32>
    %47 = tpu.reciprocal %46 {approx = true} : vector<8x1xf32> -> vector<8x1xf32>
    %48 = vector.broadcast %47 : vector<8x1xf32> to vector<8x8xf32>
    %49 = arith.mulf %44, %48 : vector<8x8xf32>
    %50 = arith.truncf %49 : vector<8x8xf32> to vector<8x8xbf16>
    %cst_18 = arith.constant dense<0.000000e+00> : vector<8x8xf32>
    %51 = tpu.matmul %50, %36, %cst_18 {dimension_numbers = #tpu.dot_dimension_numbers<[1], [0], [0], [1], [0, 0, 1, 1], [], []>} : vector<8x8xbf16>, vector<8x8xbf16>, vector<8x8xf32> -> vector<8x8xf32>
    %52 = vector.extract_strided_slice %3 {offsets = [0, 16], sizes = [8, 8], strides = [1, 1]} : vector<8x32xf32> to vector<8x8xf32>
    %53 = arith.truncf %52 : vector<8x8xf32> to vector<8x8xbf16>
    %54 = vector.extract_strided_slice %5 {offsets = [0, 16], sizes = [8, 8], strides = [1, 1]} : vector<8x32xf32> to vector<8x8xf32>
    %55 = arith.truncf %54 : vector<8x8xf32> to vector<8x8xbf16>
    %56 = vector.extract_strided_slice %7 {offsets = [0, 16], sizes = [8, 8], strides = [1, 1]} : vector<8x32xf32> to vector<8x8xf32>
    %57 = arith.truncf %56 : vector<8x8xf32> to vector<8x8xbf16>
    %58 = tpu.transpose %55, [1, 0] : vector<8x8xbf16> -> vector<8x8xbf16>
    %cst_19 = arith.constant dense<0.000000e+00> : vector<8x8xf32>
    %59 = tpu.matmul %53, %58, %cst_19 {dimension_numbers = #tpu.dot_dimension_numbers<[1], [0], [0], [1], [0, 0, 1, 1], [], []>} : vector<8x8xbf16>, vector<8x8xbf16>, vector<8x8xf32> -> vector<8x8xf32>
    %60 = arith.addf %59, %9 : vector<8x8xf32>
    %cst_20 = arith.constant dense<0xFF800000> : vector<8xf32>
    %61 = vector.multi_reduction <maximumf>, %60, %cst_20 [1] : vector<8x8xf32> to vector<8xf32>
    %62 = vector.shape_cast %61 : vector<8xf32> to vector<8x1xf32>
    %63 = vector.broadcast %62 : vector<8x1xf32> to vector<8x8xf32>
    %64 = arith.subf %60, %63 : vector<8x8xf32>
    %65 = math.exp %64 : vector<8x8xf32>
    %cst_21 = arith.constant dense<0.000000e+00> : vector<8xf32>
    %66 = vector.multi_reduction <add>, %65, %cst_21 [1] : vector<8x8xf32> to vector<8xf32>
    %67 = vector.shape_cast %66 : vector<8xf32> to vector<8x1xf32>
    %68 = tpu.reciprocal %67 {approx = true} : vector<8x1xf32> -> vector<8x1xf32>
    %69 = vector.broadcast %68 : vector<8x1xf32> to vector<8x8xf32>
    %70 = arith.mulf %65, %69 : vector<8x8xf32>
    %71 = arith.truncf %70 : vector<8x8xf32> to vector<8x8xbf16>
    %cst_22 = arith.constant dense<0.000000e+00> : vector<8x8xf32>
    %72 = tpu.matmul %71, %57, %cst_22 {dimension_numbers = #tpu.dot_dimension_numbers<[1], [0], [0], [1], [0, 0, 1, 1], [], []>} : vector<8x8xbf16>, vector<8x8xbf16>, vector<8x8xf32> -> vector<8x8xf32>
    %73 = vector.extract_strided_slice %3 {offsets = [0, 24], sizes = [8, 8], strides = [1, 1]} : vector<8x32xf32> to vector<8x8xf32>
    %74 = arith.truncf %73 : vector<8x8xf32> to vector<8x8xbf16>
    %75 = vector.extract_strided_slice %5 {offsets = [0, 24], sizes = [8, 8], strides = [1, 1]} : vector<8x32xf32> to vector<8x8xf32>
    %76 = arith.truncf %75 : vector<8x8xf32> to vector<8x8xbf16>
    %77 = vector.extract_strided_slice %7 {offsets = [0, 24], sizes = [8, 8], strides = [1, 1]} : vector<8x32xf32> to vector<8x8xf32>
    %78 = arith.truncf %77 : vector<8x8xf32> to vector<8x8xbf16>
    %79 = tpu.transpose %76, [1, 0] : vector<8x8xbf16> -> vector<8x8xbf16>
    %cst_23 = arith.constant dense<0.000000e+00> : vector<8x8xf32>
    %80 = tpu.matmul %74, %79, %cst_23 {dimension_numbers = #tpu.dot_dimension_numbers<[1], [0], [0], [1], [0, 0, 1, 1], [], []>} : vector<8x8xbf16>, vector<8x8xbf16>, vector<8x8xf32> -> vector<8x8xf32>
    %81 = arith.addf %80, %9 : vector<8x8xf32>
    %cst_24 = arith.constant dense<0xFF800000> : vector<8xf32>
    %82 = vector.multi_reduction <maximumf>, %81, %cst_24 [1] : vector<8x8xf32> to vector<8xf32>
    %83 = vector.shape_cast %82 : vector<8xf32> to vector<8x1xf32>
    %84 = vector.broadcast %83 : vector<8x1xf32> to vector<8x8xf32>
    %85 = arith.subf %81, %84 : vector<8x8xf32>
    %86 = math.exp %85 : vector<8x8xf32>
    %cst_25 = arith.constant dense<0.000000e+00> : vector<8xf32>
    %87 = vector.multi_reduction <add>, %86, %cst_25 [1] : vector<8x8xf32> to vector<8xf32>
    %88 = vector.shape_cast %87 : vector<8xf32> to vector<8x1xf32>
    %89 = tpu.reciprocal %88 {approx = true} : vector<8x1xf32> -> vector<8x1xf32>
    %90 = vector.broadcast %89 : vector<8x1xf32> to vector<8x8xf32>
    %91 = arith.mulf %86, %90 : vector<8x8xf32>
    %92 = arith.truncf %91 : vector<8x8xf32> to vector<8x8xbf16>
    %cst_26 = arith.constant dense<0.000000e+00> : vector<8x8xf32>
    %93 = tpu.matmul %92, %78, %cst_26 {dimension_numbers = #tpu.dot_dimension_numbers<[1], [0], [0], [1], [0, 0, 1, 1], [], []>} : vector<8x8xbf16>, vector<8x8xbf16>, vector<8x8xf32> -> vector<8x8xf32>
    %94 = tpu.concatenate %30, %51, %72, %93 in 1 : vector<8x8xf32>, vector<8x8xf32>, vector<8x8xf32>, vector<8x8xf32> -> vector<8x32xf32>
    %c0_27 = arith.constant 0 : index
    %c0_28 = arith.constant 0 : index
    %c0_29 = arith.constant 0 : index
    %95 = vector.load %arg5[%c0_27, %c0_28, %c0_29] : memref<1x8x32xf32, #tpu.memory_space<vmem>>, vector<1x8x32xf32>
    %96 = vector.shape_cast %95 : vector<1x8x32xf32> to vector<8x32xf32>
    %97 = vector.shape_cast %94 : vector<8x32xf32> to vector<1x8x32xf32>
    tpu.vector_store %arg5[%c0_27, %c0_28, %c0_29], %97 {strides = array<i32>} : memref<1x8x32xf32, #tpu.memory_space<vmem>>, vector<1x8x32xf32>,
    return
  }
  func.func @transform_0(%arg0: i32) -> (i32, i32, i32) {
    %c0_i32 = arith.constant 0 : i32
    %c0_i32_0 = arith.constant 0 : i32
    %c0_i32_1 = arith.constant 0 : i32
    return %arg0, %c0_i32, %c0_i32_0 : i32, i32, i32
  }
  func.func @transform_1(%arg0: i32) -> (i32, i32, i32) {
    %c0_i32 = arith.constant 0 : i32
    %c0_i32_0 = arith.constant 0 : i32
    %c0_i32_1 = arith.constant 0 : i32
    return %arg0, %c0_i32, %c0_i32_0 : i32, i32, i32
  }
  func.func @transform_2(%arg0: i32) -> (i32, i32, i32) {
    %c0_i32 = arith.constant 0 : i32
    %c0_i32_0 = arith.constant 0 : i32
    %c0_i32_1 = arith.constant 0 : i32
    return %arg0, %c0_i32, %c0_i32_0 : i32, i32, i32
  }
  func.func @transform_3(%arg0: i32) -> (i32, i32, i32) {
    %c0_i32 = arith.constant 0 : i32
    %c0_i32_0 = arith.constant 0 : i32
    %c0_i32_1 = arith.constant 0 : i32
    return %arg0, %c0_i32, %c0_i32_0 : i32, i32, i32
  }
  func.func @transform_4(%arg0: i32) -> (i32, i32, i32) {
    %c0_i32 = arith.constant 0 : i32
    %c0_i32_0 = arith.constant 0 : i32
    %c0_i32_1 = arith.constant 0 : i32
    return %arg0, %c0_i32, %c0_i32_0 : i32, i32, i32
  }
}

module attributes {stable_mosaic.version = 11 : i64} {
  func.func @_matmul_res_ln_kernel(%arg0: i32, %arg1: memref<16x32xf32, #tpu.memory_space<vmem>>, %arg2: memref<32x32xf32, #tpu.memory_space<vmem>>, %arg3: memref<1x32xf32, #tpu.memory_space<vmem>>, %arg4: memref<16x32xf32, #tpu.memory_space<vmem>>, %arg5: memref<1x32xf32, #tpu.memory_space<vmem>>, %arg6: memref<1x32xf32, #tpu.memory_space<vmem>>, %arg7: memref<16x32xf32, #tpu.memory_space<vmem>>) attributes {dimension_semantics = [#tpu.dimension_semantics<parallel>], iteration_bounds = array<i64: 1>, scalar_prefetch = 0 : i64, scratch_operands = 0 : i64, tpu.core_type = #tpu.core_type<tc>, window_params = [{transform_indices = @transform_0, window_bounds = array<i64: 16, 32>}, {pipeline_mode = #tpu.pipeline_mode<synchronous>, transform_indices = @transform_1, window_bounds = array<i64: 32, 32>}, {pipeline_mode = #tpu.pipeline_mode<synchronous>, transform_indices = @transform_2, window_bounds = array<i64: 1, 32>}, {transform_indices = @transform_3, window_bounds = array<i64: 16, 32>}, {pipeline_mode = #tpu.pipeline_mode<synchronous>, transform_indices = @transform_4, window_bounds = array<i64: 1, 32>}, {pipeline_mode = #tpu.pipeline_mode<synchronous>, transform_indices = @transform_5, window_bounds = array<i64: 1, 32>}, {transform_indices = @transform_6, window_bounds = array<i64: 16, 32>}]} {
    %c0 = arith.constant 0 : index
    %c0_0 = arith.constant 0 : index
    %0 = vector.load %arg1[%c0, %c0_0] : memref<16x32xf32, #tpu.memory_space<vmem>>, vector<16x32xf32>
    %1 = arith.truncf %0 : vector<16x32xf32> to vector<16x32xbf16>
    %c0_1 = arith.constant 0 : index
    %c0_2 = arith.constant 0 : index
    %2 = vector.load %arg2[%c0_1, %c0_2] : memref<32x32xf32, #tpu.memory_space<vmem>>, vector<32x32xf32>
    %3 = arith.truncf %2 : vector<32x32xf32> to vector<32x32xbf16>
    %cst = arith.constant dense<0.000000e+00> : vector<16x32xf32>
    %4 = tpu.matmul %1, %3, %cst {dimension_numbers = #tpu.dot_dimension_numbers<[1], [0], [0], [1], [0, 0, 1, 1], [], []>} : vector<16x32xbf16>, vector<32x32xbf16>, vector<16x32xf32> -> vector<16x32xf32>
    %c0_3 = arith.constant 0 : index
    %c0_4 = arith.constant 0 : index
    %5 = vector.load %arg3[%c0_3, %c0_4] : memref<1x32xf32, #tpu.memory_space<vmem>>, vector<1x32xf32>
    %6 = vector.broadcast %5 : vector<1x32xf32> to vector<16x32xf32>
    %7 = arith.addf %4, %6 : vector<16x32xf32>
    %c0_5 = arith.constant 0 : index
    %c0_6 = arith.constant 0 : index
    %8 = vector.load %arg4[%c0_5, %c0_6] : memref<16x32xf32, #tpu.memory_space<vmem>>, vector<16x32xf32>
    %9 = arith.addf %7, %8 : vector<16x32xf32>
    %cst_7 = arith.constant dense<0.000000e+00> : vector<16xf32>
    %10 = vector.multi_reduction <add>, %9, %cst_7 [1] : vector<16x32xf32> to vector<16xf32>
    %11 = vector.shape_cast %10 : vector<16xf32> to vector<16x1xf32>
    %cst_8 = arith.constant 3.200000e+01 : f32
    %12 = vector.broadcast %cst_8 : f32 to vector<16x1xf32>
    %13 = arith.divf %11, %12 : vector<16x1xf32>
    %14 = vector.broadcast %13 : vector<16x1xf32> to vector<16x32xf32>
    %15 = arith.subf %9, %14 : vector<16x32xf32>
    %16 = arith.mulf %15, %15 : vector<16x32xf32>
    %cst_9 = arith.constant dense<0.000000e+00> : vector<16xf32>
    %17 = vector.multi_reduction <add>, %16, %cst_9 [1] : vector<16x32xf32> to vector<16xf32>
    %18 = vector.shape_cast %17 : vector<16xf32> to vector<16x1xf32>
    %cst_10 = arith.constant 3.200000e+01 : f32
    %19 = vector.broadcast %cst_10 : f32 to vector<16x1xf32>
    %20 = arith.divf %18, %19 : vector<16x1xf32>
    %21 = vector.broadcast %13 : vector<16x1xf32> to vector<16x32xf32>
    %22 = arith.subf %9, %21 : vector<16x32xf32>
    %cst_11 = arith.constant 9.99999974E-6 : f32
    %23 = vector.broadcast %cst_11 : f32 to vector<16x1xf32>
    %24 = arith.addf %20, %23 : vector<16x1xf32>
    %25 = math.rsqrt %24 : vector<16x1xf32>
    %26 = vector.broadcast %25 : vector<16x1xf32> to vector<16x32xf32>
    %27 = arith.mulf %22, %26 : vector<16x32xf32>
    %c0_12 = arith.constant 0 : index
    %c0_13 = arith.constant 0 : index
    %28 = vector.load %arg5[%c0_12, %c0_13] : memref<1x32xf32, #tpu.memory_space<vmem>>, vector<1x32xf32>
    %29 = vector.broadcast %28 : vector<1x32xf32> to vector<16x32xf32>
    %30 = arith.mulf %27, %29 : vector<16x32xf32>
    %c0_14 = arith.constant 0 : index
    %c0_15 = arith.constant 0 : index
    %31 = vector.load %arg6[%c0_14, %c0_15] : memref<1x32xf32, #tpu.memory_space<vmem>>, vector<1x32xf32>
    %32 = vector.broadcast %31 : vector<1x32xf32> to vector<16x32xf32>
    %33 = arith.addf %30, %32 : vector<16x32xf32>
    %c0_16 = arith.constant 0 : index
    %c0_17 = arith.constant 0 : index
    %34 = vector.load %arg7[%c0_16, %c0_17] : memref<16x32xf32, #tpu.memory_space<vmem>>, vector<16x32xf32>
    tpu.vector_store %arg7[%c0_16, %c0_17], %33 {strides = array<i32>} : memref<16x32xf32, #tpu.memory_space<vmem>>, vector<16x32xf32>,
    return
  }
  func.func @transform_0(%arg0: i32) -> (i32, i32) {
    %c0_i32 = arith.constant 0 : i32
    %c0_i32_0 = arith.constant 0 : i32
    return %arg0, %c0_i32 : i32, i32
  }
  func.func @transform_1(%arg0: i32) -> (i32, i32) {
    %c0_i32 = arith.constant 0 : i32
    %c0_i32_0 = arith.constant 0 : i32
    %c0_i32_1 = arith.constant 0 : i32
    return %c0_i32, %c0_i32_0 : i32, i32
  }
  func.func @transform_2(%arg0: i32) -> (i32, i32) {
    %c0_i32 = arith.constant 0 : i32
    %c0_i32_0 = arith.constant 0 : i32
    %c0_i32_1 = arith.constant 0 : i32
    return %c0_i32, %c0_i32_0 : i32, i32
  }
  func.func @transform_3(%arg0: i32) -> (i32, i32) {
    %c0_i32 = arith.constant 0 : i32
    %c0_i32_0 = arith.constant 0 : i32
    return %arg0, %c0_i32 : i32, i32
  }
  func.func @transform_4(%arg0: i32) -> (i32, i32) {
    %c0_i32 = arith.constant 0 : i32
    %c0_i32_0 = arith.constant 0 : i32
    %c0_i32_1 = arith.constant 0 : i32
    return %c0_i32, %c0_i32_0 : i32, i32
  }
  func.func @transform_5(%arg0: i32) -> (i32, i32) {
    %c0_i32 = arith.constant 0 : i32
    %c0_i32_0 = arith.constant 0 : i32
    %c0_i32_1 = arith.constant 0 : i32
    return %c0_i32, %c0_i32_0 : i32, i32
  }
  func.func @transform_6(%arg0: i32) -> (i32, i32) {
    %c0_i32 = arith.constant 0 : i32
    %c0_i32_0 = arith.constant 0 : i32
    return %arg0, %c0_i32 : i32, i32
  }
}

module attributes {stable_mosaic.version = 11 : i64} {
  func.func @_proj_kernel(%arg0: i32, %arg1: memref<16x32xf32, #tpu.memory_space<vmem>>, %arg2: memref<32x32xf32, #tpu.memory_space<vmem>>, %arg3: memref<1x32xf32, #tpu.memory_space<vmem>>, %arg4: memref<16x32xf32, #tpu.memory_space<vmem>>) attributes {dimension_semantics = [#tpu.dimension_semantics<parallel>], iteration_bounds = array<i64: 1>, scalar_prefetch = 0 : i64, scratch_operands = 0 : i64, tpu.core_type = #tpu.core_type<tc>, window_params = [{transform_indices = @transform_0, window_bounds = array<i64: 16, 32>}, {pipeline_mode = #tpu.pipeline_mode<synchronous>, transform_indices = @transform_1, window_bounds = array<i64: 32, 32>}, {pipeline_mode = #tpu.pipeline_mode<synchronous>, transform_indices = @transform_2, window_bounds = array<i64: 1, 32>}, {transform_indices = @transform_3, window_bounds = array<i64: 16, 32>}]} {
    %c0 = arith.constant 0 : index
    %c0_0 = arith.constant 0 : index
    %0 = vector.load %arg1[%c0, %c0_0] : memref<16x32xf32, #tpu.memory_space<vmem>>, vector<16x32xf32>
    %1 = arith.truncf %0 : vector<16x32xf32> to vector<16x32xbf16>
    %c0_1 = arith.constant 0 : index
    %c0_2 = arith.constant 0 : index
    %2 = vector.load %arg2[%c0_1, %c0_2] : memref<32x32xf32, #tpu.memory_space<vmem>>, vector<32x32xf32>
    %3 = arith.truncf %2 : vector<32x32xf32> to vector<32x32xbf16>
    %cst = arith.constant dense<0.000000e+00> : vector<16x32xf32>
    %4 = tpu.matmul %1, %3, %cst {dimension_numbers = #tpu.dot_dimension_numbers<[1], [0], [0], [1], [0, 0, 1, 1], [], []>} : vector<16x32xbf16>, vector<32x32xbf16>, vector<16x32xf32> -> vector<16x32xf32>
    %c0_3 = arith.constant 0 : index
    %c0_4 = arith.constant 0 : index
    %5 = vector.load %arg3[%c0_3, %c0_4] : memref<1x32xf32, #tpu.memory_space<vmem>>, vector<1x32xf32>
    %6 = vector.broadcast %5 : vector<1x32xf32> to vector<16x32xf32>
    %7 = arith.addf %4, %6 : vector<16x32xf32>
    %c0_5 = arith.constant 0 : index
    %c0_6 = arith.constant 0 : index
    %8 = vector.load %arg4[%c0_5, %c0_6] : memref<16x32xf32, #tpu.memory_space<vmem>>, vector<16x32xf32>
    tpu.vector_store %arg4[%c0_5, %c0_6], %7 {strides = array<i32>} : memref<16x32xf32, #tpu.memory_space<vmem>>, vector<16x32xf32>,
    return
  }
  func.func @transform_0(%arg0: i32) -> (i32, i32) {
    %c0_i32 = arith.constant 0 : i32
    %c0_i32_0 = arith.constant 0 : i32
    return %arg0, %c0_i32 : i32, i32
  }
  func.func @transform_1(%arg0: i32) -> (i32, i32) {
    %c0_i32 = arith.constant 0 : i32
    %c0_i32_0 = arith.constant 0 : i32
    %c0_i32_1 = arith.constant 0 : i32
    return %c0_i32, %c0_i32_0 : i32, i32
  }
  func.func @transform_2(%arg0: i32) -> (i32, i32) {
    %c0_i32 = arith.constant 0 : i32
    %c0_i32_0 = arith.constant 0 : i32
    %c0_i32_1 = arith.constant 0 : i32
    return %c0_i32, %c0_i32_0 : i32, i32
  }
  func.func @transform_3(%arg0: i32) -> (i32, i32) {
    %c0_i32 = arith.constant 0 : i32
    %c0_i32_0 = arith.constant 0 : i32
    return %arg0, %c0_i32 : i32, i32
  }
}

module attributes {stable_mosaic.version = 11 : i64} {
  func.func @_proj_kernel(%arg0: i32, %arg1: memref<16x32xf32, #tpu.memory_space<vmem>>, %arg2: memref<32x64xf32, #tpu.memory_space<vmem>>, %arg3: memref<1x64xf32, #tpu.memory_space<vmem>>, %arg4: memref<16x32xf32, #tpu.memory_space<vmem>>, %arg5: memref<16x32xf32, #tpu.memory_space<vmem>>) attributes {dimension_semantics = [#tpu.dimension_semantics<parallel>], iteration_bounds = array<i64: 1>, scalar_prefetch = 0 : i64, scratch_operands = 0 : i64, tpu.core_type = #tpu.core_type<tc>, window_params = [{transform_indices = @transform_0, window_bounds = array<i64: 16, 32>}, {pipeline_mode = #tpu.pipeline_mode<synchronous>, transform_indices = @transform_1, window_bounds = array<i64: 32, 64>}, {pipeline_mode = #tpu.pipeline_mode<synchronous>, transform_indices = @transform_2, window_bounds = array<i64: 1, 64>}, {transform_indices = @transform_3, window_bounds = array<i64: 16, 32>}, {transform_indices = @transform_4, window_bounds = array<i64: 16, 32>}]} {
    %c0 = arith.constant 0 : index
    %c0_0 = arith.constant 0 : index
    %0 = vector.load %arg1[%c0, %c0_0] : memref<16x32xf32, #tpu.memory_space<vmem>>, vector<16x32xf32>
    %1 = arith.truncf %0 : vector<16x32xf32> to vector<16x32xbf16>
    %c0_1 = arith.constant 0 : index
    %c0_2 = arith.constant 0 : index
    %2 = vector.load %arg2[%c0_1, %c0_2] : memref<32x64xf32, #tpu.memory_space<vmem>>, vector<32x64xf32>
    %3 = arith.truncf %2 : vector<32x64xf32> to vector<32x64xbf16>
    %cst = arith.constant dense<0.000000e+00> : vector<16x64xf32>
    %4 = tpu.matmul %1, %3, %cst {dimension_numbers = #tpu.dot_dimension_numbers<[1], [0], [0], [1], [0, 0, 1, 1], [], []>} : vector<16x32xbf16>, vector<32x64xbf16>, vector<16x64xf32> -> vector<16x64xf32>
    %c0_3 = arith.constant 0 : index
    %c0_4 = arith.constant 0 : index
    %5 = vector.load %arg3[%c0_3, %c0_4] : memref<1x64xf32, #tpu.memory_space<vmem>>, vector<1x64xf32>
    %6 = vector.broadcast %5 : vector<1x64xf32> to vector<16x64xf32>
    %7 = arith.addf %4, %6 : vector<16x64xf32>
    %8 = vector.extract_strided_slice %7 {offsets = [0, 0], sizes = [16, 32], strides = [1, 1]} : vector<16x64xf32> to vector<16x32xf32>
    %c0_5 = arith.constant 0 : index
    %c0_6 = arith.constant 0 : index
    %9 = vector.load %arg4[%c0_5, %c0_6] : memref<16x32xf32, #tpu.memory_space<vmem>>, vector<16x32xf32>
    tpu.vector_store %arg4[%c0_5, %c0_6], %8 {strides = array<i32>} : memref<16x32xf32, #tpu.memory_space<vmem>>, vector<16x32xf32>,
    %10 = vector.extract_strided_slice %7 {offsets = [0, 32], sizes = [16, 32], strides = [1, 1]} : vector<16x64xf32> to vector<16x32xf32>
    %c0_7 = arith.constant 0 : index
    %c0_8 = arith.constant 0 : index
    %11 = vector.load %arg5[%c0_7, %c0_8] : memref<16x32xf32, #tpu.memory_space<vmem>>, vector<16x32xf32>
    tpu.vector_store %arg5[%c0_7, %c0_8], %10 {strides = array<i32>} : memref<16x32xf32, #tpu.memory_space<vmem>>, vector<16x32xf32>,
    return
  }
  func.func @transform_0(%arg0: i32) -> (i32, i32) {
    %c0_i32 = arith.constant 0 : i32
    %c0_i32_0 = arith.constant 0 : i32
    return %arg0, %c0_i32 : i32, i32
  }
  func.func @transform_1(%arg0: i32) -> (i32, i32) {
    %c0_i32 = arith.constant 0 : i32
    %c0_i32_0 = arith.constant 0 : i32
    %c0_i32_1 = arith.constant 0 : i32
    return %c0_i32, %c0_i32_0 : i32, i32
  }
  func.func @transform_2(%arg0: i32) -> (i32, i32) {
    %c0_i32 = arith.constant 0 : i32
    %c0_i32_0 = arith.constant 0 : i32
    %c0_i32_1 = arith.constant 0 : i32
    return %c0_i32, %c0_i32_0 : i32, i32
  }
  func.func @transform_3(%arg0: i32) -> (i32, i32) {
    %c0_i32 = arith.constant 0 : i32
    %c0_i32_0 = arith.constant 0 : i32
    return %arg0, %c0_i32 : i32, i32
  }
  func.func @transform_4(%arg0: i32) -> (i32, i32) {
    %c0_i32 = arith.constant 0 : i32
    %c0_i32_0 = arith.constant 0 : i32
    return %arg0, %c0_i32 : i32, i32
  }
}

module attributes {stable_mosaic.version = 11 : i64} {
  func.func @_proj_kernel(%arg0: i32, %arg1: memref<16x32xf32, #tpu.memory_space<vmem>>, %arg2: memref<32x64xf32, #tpu.memory_space<vmem>>, %arg3: memref<1x64xf32, #tpu.memory_space<vmem>>, %arg4: memref<16x64xf32, #tpu.memory_space<vmem>>) attributes {dimension_semantics = [#tpu.dimension_semantics<parallel>], iteration_bounds = array<i64: 1>, scalar_prefetch = 0 : i64, scratch_operands = 0 : i64, tpu.core_type = #tpu.core_type<tc>, window_params = [{transform_indices = @transform_0, window_bounds = array<i64: 16, 32>}, {pipeline_mode = #tpu.pipeline_mode<synchronous>, transform_indices = @transform_1, window_bounds = array<i64: 32, 64>}, {pipeline_mode = #tpu.pipeline_mode<synchronous>, transform_indices = @transform_2, window_bounds = array<i64: 1, 64>}, {transform_indices = @transform_3, window_bounds = array<i64: 16, 64>}]} {
    %c0 = arith.constant 0 : index
    %c0_0 = arith.constant 0 : index
    %0 = vector.load %arg1[%c0, %c0_0] : memref<16x32xf32, #tpu.memory_space<vmem>>, vector<16x32xf32>
    %1 = arith.truncf %0 : vector<16x32xf32> to vector<16x32xbf16>
    %c0_1 = arith.constant 0 : index
    %c0_2 = arith.constant 0 : index
    %2 = vector.load %arg2[%c0_1, %c0_2] : memref<32x64xf32, #tpu.memory_space<vmem>>, vector<32x64xf32>
    %3 = arith.truncf %2 : vector<32x64xf32> to vector<32x64xbf16>
    %cst = arith.constant dense<0.000000e+00> : vector<16x64xf32>
    %4 = tpu.matmul %1, %3, %cst {dimension_numbers = #tpu.dot_dimension_numbers<[1], [0], [0], [1], [0, 0, 1, 1], [], []>} : vector<16x32xbf16>, vector<32x64xbf16>, vector<16x64xf32> -> vector<16x64xf32>
    %c0_3 = arith.constant 0 : index
    %c0_4 = arith.constant 0 : index
    %5 = vector.load %arg3[%c0_3, %c0_4] : memref<1x64xf32, #tpu.memory_space<vmem>>, vector<1x64xf32>
    %6 = vector.broadcast %5 : vector<1x64xf32> to vector<16x64xf32>
    %7 = arith.addf %4, %6 : vector<16x64xf32>
    %cst_5 = arith.constant 0.000000e+00 : f32
    %8 = vector.broadcast %cst_5 : f32 to vector<16x64xf32>
    %9 = arith.maximumf %7, %8 : vector<16x64xf32>
    %c0_6 = arith.constant 0 : index
    %c0_7 = arith.constant 0 : index
    %10 = vector.load %arg4[%c0_6, %c0_7] : memref<16x64xf32, #tpu.memory_space<vmem>>, vector<16x64xf32>
    tpu.vector_store %arg4[%c0_6, %c0_7], %9 {strides = array<i32>} : memref<16x64xf32, #tpu.memory_space<vmem>>, vector<16x64xf32>,
    return
  }
  func.func @transform_0(%arg0: i32) -> (i32, i32) {
    %c0_i32 = arith.constant 0 : i32
    %c0_i32_0 = arith.constant 0 : i32
    return %arg0, %c0_i32 : i32, i32
  }
  func.func @transform_1(%arg0: i32) -> (i32, i32) {
    %c0_i32 = arith.constant 0 : i32
    %c0_i32_0 = arith.constant 0 : i32
    %c0_i32_1 = arith.constant 0 : i32
    return %c0_i32, %c0_i32_0 : i32, i32
  }
  func.func @transform_2(%arg0: i32) -> (i32, i32) {
    %c0_i32 = arith.constant 0 : i32
    %c0_i32_0 = arith.constant 0 : i32
    %c0_i32_1 = arith.constant 0 : i32
    return %c0_i32, %c0_i32_0 : i32, i32
  }
  func.func @transform_3(%arg0: i32) -> (i32, i32) {
    %c0_i32 = arith.constant 0 : i32
    %c0_i32_0 = arith.constant 0 : i32
    return %arg0, %c0_i32 : i32, i32
  }
}

module attributes {stable_mosaic.version = 11 : i64} {
  func.func @_matmul_res_ln_kernel(%arg0: i32, %arg1: memref<16x64xf32, #tpu.memory_space<vmem>>, %arg2: memref<64x32xf32, #tpu.memory_space<vmem>>, %arg3: memref<1x32xf32, #tpu.memory_space<vmem>>, %arg4: memref<16x32xf32, #tpu.memory_space<vmem>>, %arg5: memref<1x32xf32, #tpu.memory_space<vmem>>, %arg6: memref<1x32xf32, #tpu.memory_space<vmem>>, %arg7: memref<16x32xf32, #tpu.memory_space<vmem>>) attributes {dimension_semantics = [#tpu.dimension_semantics<parallel>], iteration_bounds = array<i64: 1>, scalar_prefetch = 0 : i64, scratch_operands = 0 : i64, tpu.core_type = #tpu.core_type<tc>, window_params = [{transform_indices = @transform_0, window_bounds = array<i64: 16, 64>}, {pipeline_mode = #tpu.pipeline_mode<synchronous>, transform_indices = @transform_1, window_bounds = array<i64: 64, 32>}, {pipeline_mode = #tpu.pipeline_mode<synchronous>, transform_indices = @transform_2, window_bounds = array<i64: 1, 32>}, {transform_indices = @transform_3, window_bounds = array<i64: 16, 32>}, {pipeline_mode = #tpu.pipeline_mode<synchronous>, transform_indices = @transform_4, window_bounds = array<i64: 1, 32>}, {pipeline_mode = #tpu.pipeline_mode<synchronous>, transform_indices = @transform_5, window_bounds = array<i64: 1, 32>}, {transform_indices = @transform_6, window_bounds = array<i64: 16, 32>}]} {
    %c0 = arith.constant 0 : index
    %c0_0 = arith.constant 0 : index
    %0 = vector.load %arg1[%c0, %c0_0] : memref<16x64xf32, #tpu.memory_space<vmem>>, vector<16x64xf32>
    %1 = arith.truncf %0 : vector<16x64xf32> to vector<16x64xbf16>
    %c0_1 = arith.constant 0 : index
    %c0_2 = arith.constant 0 : index
    %2 = vector.load %arg2[%c0_1, %c0_2] : memref<64x32xf32, #tpu.memory_space<vmem>>, vector<64x32xf32>
    %3 = arith.truncf %2 : vector<64x32xf32> to vector<64x32xbf16>
    %cst = arith.constant dense<0.000000e+00> : vector<16x32xf32>
    %4 = tpu.matmul %1, %3, %cst {dimension_numbers = #tpu.dot_dimension_numbers<[1], [0], [0], [1], [0, 0, 1, 1], [], []>} : vector<16x64xbf16>, vector<64x32xbf16>, vector<16x32xf32> -> vector<16x32xf32>
    %c0_3 = arith.constant 0 : index
    %c0_4 = arith.constant 0 : index
    %5 = vector.load %arg3[%c0_3, %c0_4] : memref<1x32xf32, #tpu.memory_space<vmem>>, vector<1x32xf32>
    %6 = vector.broadcast %5 : vector<1x32xf32> to vector<16x32xf32>
    %7 = arith.addf %4, %6 : vector<16x32xf32>
    %c0_5 = arith.constant 0 : index
    %c0_6 = arith.constant 0 : index
    %8 = vector.load %arg4[%c0_5, %c0_6] : memref<16x32xf32, #tpu.memory_space<vmem>>, vector<16x32xf32>
    %9 = arith.addf %7, %8 : vector<16x32xf32>
    %cst_7 = arith.constant dense<0.000000e+00> : vector<16xf32>
    %10 = vector.multi_reduction <add>, %9, %cst_7 [1] : vector<16x32xf32> to vector<16xf32>
    %11 = vector.shape_cast %10 : vector<16xf32> to vector<16x1xf32>
    %cst_8 = arith.constant 3.200000e+01 : f32
    %12 = vector.broadcast %cst_8 : f32 to vector<16x1xf32>
    %13 = arith.divf %11, %12 : vector<16x1xf32>
    %14 = vector.broadcast %13 : vector<16x1xf32> to vector<16x32xf32>
    %15 = arith.subf %9, %14 : vector<16x32xf32>
    %16 = arith.mulf %15, %15 : vector<16x32xf32>
    %cst_9 = arith.constant dense<0.000000e+00> : vector<16xf32>
    %17 = vector.multi_reduction <add>, %16, %cst_9 [1] : vector<16x32xf32> to vector<16xf32>
    %18 = vector.shape_cast %17 : vector<16xf32> to vector<16x1xf32>
    %cst_10 = arith.constant 3.200000e+01 : f32
    %19 = vector.broadcast %cst_10 : f32 to vector<16x1xf32>
    %20 = arith.divf %18, %19 : vector<16x1xf32>
    %21 = vector.broadcast %13 : vector<16x1xf32> to vector<16x32xf32>
    %22 = arith.subf %9, %21 : vector<16x32xf32>
    %cst_11 = arith.constant 9.99999974E-6 : f32
    %23 = vector.broadcast %cst_11 : f32 to vector<16x1xf32>
    %24 = arith.addf %20, %23 : vector<16x1xf32>
    %25 = math.rsqrt %24 : vector<16x1xf32>
    %26 = vector.broadcast %25 : vector<16x1xf32> to vector<16x32xf32>
    %27 = arith.mulf %22, %26 : vector<16x32xf32>
    %c0_12 = arith.constant 0 : index
    %c0_13 = arith.constant 0 : index
    %28 = vector.load %arg5[%c0_12, %c0_13] : memref<1x32xf32, #tpu.memory_space<vmem>>, vector<1x32xf32>
    %29 = vector.broadcast %28 : vector<1x32xf32> to vector<16x32xf32>
    %30 = arith.mulf %27, %29 : vector<16x32xf32>
    %c0_14 = arith.constant 0 : index
    %c0_15 = arith.constant 0 : index
    %31 = vector.load %arg6[%c0_14, %c0_15] : memref<1x32xf32, #tpu.memory_space<vmem>>, vector<1x32xf32>
    %32 = vector.broadcast %31 : vector<1x32xf32> to vector<16x32xf32>
    %33 = arith.addf %30, %32 : vector<16x32xf32>
    %c0_16 = arith.constant 0 : index
    %c0_17 = arith.constant 0 : index
    %34 = vector.load %arg7[%c0_16, %c0_17] : memref<16x32xf32, #tpu.memory_space<vmem>>, vector<16x32xf32>
    tpu.vector_store %arg7[%c0_16, %c0_17], %33 {strides = array<i32>} : memref<16x32xf32, #tpu.memory_space<vmem>>, vector<16x32xf32>,
    return
  }
  func.func @transform_0(%arg0: i32) -> (i32, i32) {
    %c0_i32 = arith.constant 0 : i32
    %c0_i32_0 = arith.constant 0 : i32
    return %arg0, %c0_i32 : i32, i32
  }
  func.func @transform_1(%arg0: i32) -> (i32, i32) {
    %c0_i32 = arith.constant 0 : i32
    %c0_i32_0 = arith.constant 0 : i32
    %c0_i32_1 = arith.constant 0 : i32
    return %c0_i32, %c0_i32_0 : i32, i32
  }
  func.func @transform_2(%arg0: i32) -> (i32, i32) {
    %c0_i32 = arith.constant 0 : i32
    %c0_i32_0 = arith.constant 0 : i32
    %c0_i32_1 = arith.constant 0 : i32
    return %c0_i32, %c0_i32_0 : i32, i32
  }
  func.func @transform_3(%arg0: i32) -> (i32, i32) {
    %c0_i32 = arith.constant 0 : i32
    %c0_i32_0 = arith.constant 0 : i32
    return %arg0, %c0_i32 : i32, i32
  }
  func.func @transform_4(%arg0: i32) -> (i32, i32) {
    %c0_i32 = arith.constant 0 : i32
    %c0_i32_0 = arith.constant 0 : i32
    %c0_i32_1 = arith.constant 0 : i32
    return %c0_i32, %c0_i32_0 : i32, i32
  }
  func.func @transform_5(%arg0: i32) -> (i32, i32) {
    %c0_i32 = arith.constant 0 : i32
    %c0_i32_0 = arith.constant 0 : i32
    %c0_i32_1 = arith.constant 0 : i32
    return %c0_i32, %c0_i32_0 : i32, i32
  }
  func.func @transform_6(%arg0: i32) -> (i32, i32) {
    %c0_i32 = arith.constant 0 : i32
    %c0_i32_0 = arith.constant 0 : i32
    return %arg0, %c0_i32 : i32, i32
  }
}

module attributes {stable_mosaic.version = 11 : i64} {
  func.func @_matmul_res_ln_kernel(%arg0: i32, %arg1: memref<16x64xf32, #tpu.memory_space<vmem>>, %arg2: memref<64x32xf32, #tpu.memory_space<vmem>>, %arg3: memref<1x32xf32, #tpu.memory_space<vmem>>, %arg4: memref<16x32xf32, #tpu.memory_space<vmem>>, %arg5: memref<1x32xf32, #tpu.memory_space<vmem>>, %arg6: memref<1x32xf32, #tpu.memory_space<vmem>>, %arg7: memref<16x32xf32, #tpu.memory_space<vmem>>) attributes {dimension_semantics = [#tpu.dimension_semantics<parallel>], iteration_bounds = array<i64: 1>, scalar_prefetch = 0 : i64, scratch_operands = 0 : i64, tpu.core_type = #tpu.core_type<tc>, window_params = [{transform_indices = @transform_0, window_bounds = array<i64: 16, 64>}, {pipeline_mode = #tpu.pipeline_mode<synchronous>, transform_indices = @transform_1, window_bounds = array<i64: 64, 32>}, {pipeline_mode = #tpu.pipeline_mode<synchronous>, transform_indices = @transform_2, window_bounds = array<i64: 1, 32>}, {transform_indices = @transform_3, window_bounds = array<i64: 16, 32>}, {pipeline_mode = #tpu.pipeline_mode<synchronous>, transform_indices = @transform_4, window_bounds = array<i64: 1, 32>}, {pipeline_mode = #tpu.pipeline_mode<synchronous>, transform_indices = @transform_5, window_bounds = array<i64: 1, 32>}, {transform_indices = @transform_6, window_bounds = array<i64: 16, 32>}]} {
    %c0 = arith.constant 0 : index
    %c0_0 = arith.constant 0 : index
    %0 = vector.load %arg1[%c0, %c0_0] : memref<16x64xf32, #tpu.memory_space<vmem>>, vector<16x64xf32>
    %1 = arith.truncf %0 : vector<16x64xf32> to vector<16x64xbf16>
    %c0_1 = arith.constant 0 : index
    %c0_2 = arith.constant 0 : index
    %2 = vector.load %arg2[%c0_1, %c0_2] : memref<64x32xf32, #tpu.memory_space<vmem>>, vector<64x32xf32>
    %3 = arith.truncf %2 : vector<64x32xf32> to vector<64x32xbf16>
    %cst = arith.constant dense<0.000000e+00> : vector<16x32xf32>
    %4 = tpu.matmul %1, %3, %cst {dimension_numbers = #tpu.dot_dimension_numbers<[1], [0], [0], [1], [0, 0, 1, 1], [], []>} : vector<16x64xbf16>, vector<64x32xbf16>, vector<16x32xf32> -> vector<16x32xf32>
    %c0_3 = arith.constant 0 : index
    %c0_4 = arith.constant 0 : index
    %5 = vector.load %arg3[%c0_3, %c0_4] : memref<1x32xf32, #tpu.memory_space<vmem>>, vector<1x32xf32>
    %6 = vector.broadcast %5 : vector<1x32xf32> to vector<16x32xf32>
    %7 = arith.addf %4, %6 : vector<16x32xf32>
    %c0_5 = arith.constant 0 : index
    %c0_6 = arith.constant 0 : index
    %8 = vector.load %arg4[%c0_5, %c0_6] : memref<16x32xf32, #tpu.memory_space<vmem>>, vector<16x32xf32>
    %9 = arith.addf %7, %8 : vector<16x32xf32>
    %cst_7 = arith.constant dense<0.000000e+00> : vector<16xf32>
    %10 = vector.multi_reduction <add>, %9, %cst_7 [1] : vector<16x32xf32> to vector<16xf32>
    %11 = vector.shape_cast %10 : vector<16xf32> to vector<16x1xf32>
    %cst_8 = arith.constant 3.200000e+01 : f32
    %12 = vector.broadcast %cst_8 : f32 to vector<16x1xf32>
    %13 = arith.divf %11, %12 : vector<16x1xf32>
    %14 = vector.broadcast %13 : vector<16x1xf32> to vector<16x32xf32>
    %15 = arith.subf %9, %14 : vector<16x32xf32>
    %16 = arith.mulf %15, %15 : vector<16x32xf32>
    %cst_9 = arith.constant dense<0.000000e+00> : vector<16xf32>
    %17 = vector.multi_reduction <add>, %16, %cst_9 [1] : vector<16x32xf32> to vector<16xf32>
    %18 = vector.shape_cast %17 : vector<16xf32> to vector<16x1xf32>
    %cst_10 = arith.constant 3.200000e+01 : f32
    %19 = vector.broadcast %cst_10 : f32 to vector<16x1xf32>
    %20 = arith.divf %18, %19 : vector<16x1xf32>
    %21 = vector.broadcast %13 : vector<16x1xf32> to vector<16x32xf32>
    %22 = arith.subf %9, %21 : vector<16x32xf32>
    %cst_11 = arith.constant 9.99999974E-6 : f32
    %23 = vector.broadcast %cst_11 : f32 to vector<16x1xf32>
    %24 = arith.addf %20, %23 : vector<16x1xf32>
    %25 = math.rsqrt %24 : vector<16x1xf32>
    %26 = vector.broadcast %25 : vector<16x1xf32> to vector<16x32xf32>
    %27 = arith.mulf %22, %26 : vector<16x32xf32>
    %c0_12 = arith.constant 0 : index
    %c0_13 = arith.constant 0 : index
    %28 = vector.load %arg5[%c0_12, %c0_13] : memref<1x32xf32, #tpu.memory_space<vmem>>, vector<1x32xf32>
    %29 = vector.broadcast %28 : vector<1x32xf32> to vector<16x32xf32>
    %30 = arith.mulf %27, %29 : vector<16x32xf32>
    %c0_14 = arith.constant 0 : index
    %c0_15 = arith.constant 0 : index
    %31 = vector.load %arg6[%c0_14, %c0_15] : memref<1x32xf32, #tpu.memory_space<vmem>>, vector<1x32xf32>
    %32 = vector.broadcast %31 : vector<1x32xf32> to vector<16x32xf32>
    %33 = arith.addf %30, %32 : vector<16x32xf32>
    %c0_16 = arith.constant 0 : index
    %c0_17 = arith.constant 0 : index
    %34 = vector.load %arg7[%c0_16, %c0_17] : memref<16x32xf32, #tpu.memory_space<vmem>>, vector<16x32xf32>
    tpu.vector_store %arg7[%c0_16, %c0_17], %33 {strides = array<i32>} : memref<16x32xf32, #tpu.memory_space<vmem>>, vector<16x32xf32>,
    return
  }
  func.func @transform_0(%arg0: i32) -> (i32, i32) {
    %c0_i32 = arith.constant 0 : i32
    %c0_i32_0 = arith.constant 0 : i32
    return %arg0, %c0_i32 : i32, i32
  }
  func.func @transform_1(%arg0: i32) -> (i32, i32) {
    %c0_i32 = arith.constant 0 : i32
    %c0_i32_0 = arith.constant 0 : i32
    %c0_i32_1 = arith.constant 0 : i32
    return %c0_i32, %c0_i32_0 : i32, i32
  }
  func.func @transform_2(%arg0: i32) -> (i32, i32) {
    %c0_i32 = arith.constant 0 : i32
    %c0_i32_0 = arith.constant 0 : i32
    %c0_i32_1 = arith.constant 0 : i32
    return %c0_i32, %c0_i32_0 : i32, i32
  }
  func.func @transform_3(%arg0: i32) -> (i32, i32) {
    %c0_i32 = arith.constant 0 : i32
    %c0_i32_0 = arith.constant 0 : i32
    return %arg0, %c0_i32 : i32, i32
  }
  func.func @transform_4(%arg0: i32) -> (i32, i32) {
    %c0_i32 = arith.constant 0 : i32
    %c0_i32_0 = arith.constant 0 : i32
    %c0_i32_1 = arith.constant 0 : i32
    return %c0_i32, %c0_i32_0 : i32, i32
  }
  func.func @transform_5(%arg0: i32) -> (i32, i32) {
    %c0_i32 = arith.constant 0 : i32
    %c0_i32_0 = arith.constant 0 : i32
    %c0_i32_1 = arith.constant 0 : i32
    return %c0_i32, %c0_i32_0 : i32, i32
  }
  func.func @transform_6(%arg0: i32) -> (i32, i32) {
    %c0_i32 = arith.constant 0 : i32
    %c0_i32_0 = arith.constant 0 : i32
    return %arg0, %c0_i32 : i32, i32
  }
}

</mosaic_0001>

<llo_original>
// kernel: _decoder_stack.18
$region0: #{_decoder_stack.18}
  #allocation0 [shape = 'u32[]', space=smem, size = 0x4, offset = 0x4, fixed_abs, tag = 'smem constant byte address 0x4 - core index']
  #allocation1 [shape = 'u32[144,128]{1,0:T(1,128)}', space=vmem, size = 0x12000, scoped, tag = 'internal scratch']
  %s0 = inlined_call_operand.vmem [shape: f32[16,32], index: 0, kind: input, shape index: {}]
  %s1 = inlined_call_operand.vmem [shape: f32[32,96], index: 1, kind: input, shape index: {}]
  %s2 = inlined_call_operand.vmem [shape: f32[1,96], index: 2, kind: input, shape index: {}]
  %s3 = inlined_call_operand.vmem [shape: f32[16,32], index: 3, kind: output, shape index: {0}]
  %s4 = inlined_call_operand.vmem [shape: f32[16,32], index: 4, kind: output, shape index: {1}]
  %s5 = inlined_call_operand.vmem [shape: f32[16,32], index: 5, kind: output, shape index: {2}]
  %6 = xla_tuple %s3, %s4, %s5
  %s7 = sld [smem:[#allocation0]]
  $region38: #{_decoder_stack.18} parent=0
    _
  %s9 = ssub.s32 1, %s7
  %s10 = scalar_select 0, %s9, %s7
  // Predicated region
  $region2: #{_decoder_stack.18} parent=0 // pred_check
    _
  $region3: #{_decoder_stack.18} parent=0 // pred_check_branch
    %12 = sbr.rel (0) target = $region5
  $region4: #{_decoder_stack.18} parent=0 // pred_region
    _
  $region5: #{_decoder_stack.18} parent=0 // pred_fallthru
    _
  // Predicated region
  $region6: #{_decoder_stack.18} parent=0 // pred_check
    _
  $region7: #{_decoder_stack.18} parent=0 // pred_check_branch
    %14 = sbr.rel (0) target = $region9
  $region8: #{_decoder_stack.18} parent=0 // pred_region
    _
  $region9: #{_decoder_stack.18} parent=0 // pred_fallthru
    _
  // Predicated region
  $region10: #{_decoder_stack.18} parent=0 // pred_check
    _
  $region11: #{_decoder_stack.18} parent=0 // pred_check_branch
    %16 = sbr.rel (0) target = $region13
  $region12: #{_decoder_stack.18} parent=0 // pred_region
    _
  $region13: #{_decoder_stack.18} parent=0 // pred_fallthru
    _
  %v18 = vld [vmem:[%s0] sm:$0xff]
  %v19 = vld [vmem:[%s0 + $0x8] sm:$0xff]
  %v20 = vpack.c.bf16 %v19, %v18
  %v21 = vld [vmem:[%s1] sm:$0xff]
  %v22 = vld [vmem:[%s1 + $0x8] sm:$0xff]
  %v23 = vld [vmem:[%s1 + $0x10] sm:$0xff]
  %v24 = vld [vmem:[%s1 + $0x18] sm:$0xff]
  %v25 = vpack.c.bf16 %v22, %v21
  %v26 = vpack.c.bf16 %v24, %v23
  %v27 = vld [vmem:[%s2] sm:$0x1]
  %v29 = vlaneseq
  %v30 = vshrl.u32 %v29, 7
  %v31 = vsub.s32 0, %v30
  %v32 = vrot.slane %v27, %v31
  %vm34 = vcmask 261120
  %v36 = vsel %vm34, %v20, 0
  %38 = vmatprep.subr.bf16.mxu0 0
  %39 = vmatpush1.bf16.msra.mxu0 %v25
  %40 = vmatprep.subr.bf16.mxu0 0
  %41 = vmatpush1.bf16.msra.mxu0 %v26
  %42 = vmatprep.subr.bf16.mxu0 0
  %43 = vmatpush1.bf16.msra.mxu0 0
  %44 = vmatprep.subr.bf16.mxu0 0
  %45 = vmatpush1.bf16.msra.mxu0 0
  %46 = vmatprep.subr.bf16.mxu0 0
  %47 = vmatpush1.bf16.msra.mxu0 0
  %48 = vmatprep.subr.bf16.mxu0 0
  %49 = vmatpush1.bf16.msra.mxu0 0
  %50 = vmatprep.subr.bf16.mxu0 0
  %51 = vmatpush1.bf16.msra.mxu0 0
  %52 = vmatprep.subr.bf16.mxu0 0
  %53 = vmatpush1.bf16.msra.mxu0 0
  %54 = vmatprep.subr.bf16.mxu0 0
  %55 = vmatpush1.bf16.msra.mxu0 0
  %56 = vmatprep.subr.bf16.mxu0 0
  %57 = vmatpush1.bf16.msra.mxu0 0
  %58 = vmatprep.subr.bf16.mxu0 0
  %59 = vmatpush1.bf16.msra.mxu0 0
  %60 = vmatprep.subr.bf16.mxu0 0
  %61 = vmatpush1.bf16.msra.mxu0 0
  %62 = vmatprep.subr.bf16.mxu0 0
  %63 = vmatpush1.bf16.msra.mxu0 0
  %64 = vmatprep.subr.bf16.mxu0 0
  %65 = vmatpush1.bf16.msra.mxu0 0
  %66 = vmatprep.subr.bf16.mxu0 0
  %67 = vmatpush1.bf16.msra.mxu0 0
  %68 = vmatprep.subr.bf16.mxu0 0
  %69 = vmatpush1.bf16.msra.mxu0 0
  %70 = vmatprep.mubr.bf16.mxu0 0
  %71 = vmatmul.mubr.bf16.gmra.mrb[0].mxu0 %v36
  %v72 = vpop.f32.mrb[0].mxu0
  %v73 = vadd.f32 %v32, %v72
  %v74 = vpop.f32.mrb[0].mxu0
  %v75 = vpop.f32.mrb[0].mxu0
  %v76 = vadd.f32 %v32, %v75
  %v77 = vpop.f32.mrb[0].mxu0
  %78 = vdwg.mxu0
  %79 = vst.msk [vmem:[%s3] sm:$0xff] %vm34, %v73
  %80 = vst.msk [vmem:[%s3 + $0x8] sm:$0xff] %vm34, %v76
  %83 = vrot.lane.b32.xlu0 %v73, 96
  %v84 = vpop.permute.xlu0 %83
  %85 = vrot.lane.b32.xlu0 %v76, 96
  %v86 = vpop.permute.xlu0 %85
  %89 = vst.msk [vmem:[%s4] sm:$0xff] %vm34, %v84
  %90 = vst.msk [vmem:[%s4 + $0x8] sm:$0xff] %vm34, %v86
  %91 = vrot.lane.b32.xlu0 %v73, 64
  %v92 = vpop.permute.xlu0 %91
  %93 = vrot.lane.b32.xlu0 %v76, 64
  %v94 = vpop.permute.xlu0 %93
  %97 = vst.msk [vmem:[%s5] sm:$0xff] %vm34, %v92
  %98 = vst.msk [vmem:[%s5 + $0x8] sm:$0xff] %vm34, %v94
  // Predicated region
  $region14: #{_decoder_stack.18} parent=0 // pred_check
    _
  $region15: #{_decoder_stack.18} parent=0 // pred_check_branch
    %100 = sbr.rel (0) target = $region17
  $region16: #{_decoder_stack.18} parent=0 // pred_region
    _
  $region17: #{_decoder_stack.18} parent=0 // pred_fallthru
    _
  // Predicated region
  $region18: #{_decoder_stack.18} parent=0 // pred_check
    _
  $region19: #{_decoder_stack.18} parent=0 // pred_check_branch
    %102 = sbr.rel (0) target = $region21
  $region20: #{_decoder_stack.18} parent=0 // pred_region
    _
  $region21: #{_decoder_stack.18} parent=0 // pred_fallthru
    _
  // Predicated region
  $region22: #{_decoder_stack.18} parent=0 // pred_check
    _
  $region23: #{_decoder_stack.18} parent=0 // pred_check_branch
    %104 = sbr.rel (0) target = $region25
  $region24: #{_decoder_stack.18} parent=0 // pred_region
    _
  $region25: #{_decoder_stack.18} parent=0 // pred_fallthru
    _
  // Predicated region
  $region26: #{_decoder_stack.18} parent=0 // pred_check
    _
  $region27: #{_decoder_stack.18} parent=0 // pred_check_branch
    %106 = sbr.rel (0) target = $region29
  $region28: #{_decoder_stack.18} parent=0 // pred_region
    _
  $region29: #{_decoder_stack.18} parent=0 // pred_fallthru
    _
  // Predicated region
  $region30: #{_decoder_stack.18} parent=0 // pred_check
    _
  $region31: #{_decoder_stack.18} parent=0 // pred_check_branch
    %108 = sbr.rel (0) target = $region33
  $region32: #{_decoder_stack.18} parent=0 // pred_region
    _
  $region33: #{_decoder_stack.18} parent=0 // pred_fallthru
    _
  // Predicated region
  $region34: #{_decoder_stack.18} parent=0 // pred_check
    _
  $region35: #{_decoder_stack.18} parent=0 // pred_check_branch
    %110 = sbr.rel (0) target = $region37
  $region36: #{_decoder_stack.18} parent=0 // pred_region
    _
  $region37: #{_decoder_stack.18} parent=0 // pred_fallthru
    _

// kernel: _decoder_stack.19
$region0: #{_decoder_stack.19}
  #allocation0 [shape = 'u32[]', space=smem, size = 0x4, offset = 0x4, fixed_abs, tag = 'smem constant byte address 0x4 - core index']
  #allocation1 [shape = 'u32[144,128]{1,0:T(1,128)}', space=vmem, size = 0x12000, scoped, tag = 'internal scratch']
  %s0 = inlined_call_operand.vmem [shape: f32[2,8,32], index: 0, kind: input, shape index: {}]
  %s1 = inlined_call_operand.vmem [shape: f32[2,8,32], index: 1, kind: input, shape index: {}]
  %s2 = inlined_call_operand.vmem [shape: f32[2,8,32], index: 2, kind: input, shape index: {}]
  %s3 = inlined_call_operand.vmem [shape: f32[2,8,8], index: 3, kind: input, shape index: {}]
  %s4 = inlined_call_operand.vmem [shape: f32[2,8,32], index: 4, kind: output, shape index: {}]
  %s5 = sld [smem:[#allocation0]]
  $region49: #{_decoder_stack.19} parent=0
    _
  %s7 = ssub.s32 1, %s5
  %s8 = scalar_select 0, %s7, %s5
  loop: start=0, step=1, limit=4
  $region2: #{_decoder_stack.19} parent=0 // loop_pre_header
    _
  $region3: #{_decoder_stack.19} parent=0 // loop_header
    %s10 = sphi 0, %s14
    %p11 = scmp.ge.s32.totalorder %s10, 4
    %s20 = sphi 0, %s22
    %s23 = sphi 0, %s20
    %s24 = sphi 0, %s23
    %s40 = sphi 0, %s24
    %s46 = sphi 0, %s48
    %s49 = sphi 0, %s46
    %s50 = sphi 0, %s49
    %s66 = sphi 0, %s50
    %s72 = sphi 0, %s74
    %s75 = sphi 0, %s72
    %s76 = sphi 0, %s75
    %s92 = sphi 0, %s76
    %s98 = sphi 0, %s100
    %s101 = sphi 0, %s98
    %s102 = sphi 0, %s101
    %s118 = sphi 0, %s102
    %s124 = sphi 0, %s126
    %s127 = sphi 0, %s124
    %s128 = sphi 0, %s127
    %s144 = sphi 0, %s128
  $region4: #{_decoder_stack.19} parent=0 // loop_header_branch
    %13 = sbr.rel (%p11) target = $region8
  $region5: #{_decoder_stack.19} parent=0 // loop_body
    %s15 = ssub.s32 %s10, 1
    %s16 = ssub.s32 %s10, 2
    %s17 = sadd.s32 %s10, 1
    %s18 = ssub.s32 %s10, %s17
    %p19 = scmp.eq.s32.totalorder %s18, 0
    %s21 = sadd.s32 %s20, 1
    %s22 = scalar_select %p19, %s20, %s21
    %p25 = pneg %p19
    %p26 = scmp.eq.s32.totalorder %s10, 1
    %p27 = por %p25, %p26
    %p28 = scmp.ne.s32.totalorder %s20, %s23
    %p29 = scmp.eq.s32.totalorder %s10, 0
    %p30 = por %p28, %p29
    %p31 = scmp.ne.s32.totalorder %s20, %s23
    %p32 = scmp.eq.s32.totalorder %s15, 1
    %p33 = por %p31, %p32
    %p34 = scmp.ne.s32.totalorder %s23, %s24
    %p35 = scmp.eq.s32.totalorder %s15, 0
    %p36 = por %p34, %p35
    %p37 = scmp.ne.s32.totalorder %s23, %s24
    %p38 = scmp.eq.s32.totalorder %s16, 1
    %p39 = por %p37, %p38
    %p41 = scmp.ne.s32.totalorder %s24, %s40
    %p42 = scmp.eq.s32.totalorder %s16, 0
    %p43 = por %p41, %p42
    %s44 = ssub.s32 %s10, %s17
    %p45 = scmp.eq.s32.totalorder %s44, 0
    %s47 = sadd.s32 %s46, 1
    %s48 = scalar_select %p45, %s46, %s47
    %p51 = pneg %p45
    %p52 = scmp.eq.s32.totalorder %s10, 1
    %p53 = por %p51, %p52
    %p54 = scmp.ne.s32.totalorder %s46, %s49
    %p55 = scmp.eq.s32.totalorder %s10, 0
    %p56 = por %p54, %p55
    %p57 = scmp.ne.s32.totalorder %s46, %s49
    %p58 = scmp.eq.s32.totalorder %s15, 1
    %p59 = por %p57, %p58
    %p60 = scmp.ne.s32.totalorder %s49, %s50
    %p61 = scmp.eq.s32.totalorder %s15, 0
    %p62 = por %p60, %p61
    %p63 = scmp.ne.s32.totalorder %s49, %s50
    %p64 = scmp.eq.s32.totalorder %s16, 1
    %p65 = por %p63, %p64
    %p67 = scmp.ne.s32.totalorder %s50, %s66
    %p68 = scmp.eq.s32.totalorder %s16, 0
    %p69 = por %p67, %p68
    %s70 = ssub.s32 %s10, %s17
    %p71 = scmp.eq.s32.totalorder %s70, 0
    %s73 = sadd.s32 %s72, 1
    %s74 = scalar_select %p71, %s72, %s73
    %p77 = pneg %p71
    %p78 = scmp.eq.s32.totalorder %s10, 1
    %p79 = por %p77, %p78
    %p80 = scmp.ne.s32.totalorder %s72, %s75
    %p81 = scmp.eq.s32.totalorder %s10, 0
    %p82 = por %p80, %p81
    %p83 = scmp.ne.s32.totalorder %s72, %s75
    %p84 = scmp.eq.s32.totalorder %s15, 1
    %p85 = por %p83, %p84
    %p86 = scmp.ne.s32.totalorder %s75, %s76
    %p87 = scmp.eq.s32.totalorder %s15, 0
    %p88 = por %p86, %p87
    %p89 = scmp.ne.s32.totalorder %s75, %s76
    %p90 = scmp.eq.s32.totalorder %s16, 1
    %p91 = por %p89, %p90
    %p93 = scmp.ne.s32.totalorder %s76, %s92
    %p94 = scmp.eq.s32.totalorder %s16, 0
    %p95 = por %p93, %p94
    %s96 = ssub.s32 %s10, %s17
    %p97 = scmp.eq.s32.totalorder %s96, 0
    %s99 = sadd.s32 %s98, 1
    %s100 = scalar_select %p97, %s98, %s99
    %p103 = pneg %p97
    %p104 = scmp.eq.s32.totalorder %s10, 1
    %p105 = por %p103, %p104
    %p106 = scmp.ne.s32.totalorder %s98, %s101
    %p107 = scmp.eq.s32.totalorder %s10, 0
    %p108 = por %p106, %p107
    %p109 = scmp.ne.s32.totalorder %s98, %s101
    %p110 = scmp.eq.s32.totalorder %s15, 1
    %p111 = por %p109, %p110
    %p112 = scmp.ne.s32.totalorder %s101, %s102
    %p113 = scmp.eq.s32.totalorder %s15, 0
    %p114 = por %p112, %p113
    %p115 = scmp.ne.s32.totalorder %s101, %s102
    %p116 = scmp.eq.s32.totalorder %s16, 1
    %p117 = por %p115, %p116
    %p119 = scmp.ne.s32.totalorder %s102, %s118
    %p120 = scmp.eq.s32.totalorder %s16, 0
    %p121 = por %p119, %p120
    %s122 = ssub.s32 %s10, %s17
    %p123 = scmp.eq.s32.totalorder %s122, 0
    %s125 = sadd.s32 %s124, 1
    %s126 = scalar_select %p123, %s124, %s125
    %p129 = pneg %p123
    %p130 = scmp.eq.s32.totalorder %s10, 1
    %p131 = por %p129, %p130
    %p132 = scmp.ne.s32.totalorder %s124, %s127
    %p133 = scmp.eq.s32.totalorder %s10, 0
    %p134 = por %p132, %p133
    %p135 = scmp.ne.s32.totalorder %s124, %s127
    %p136 = scmp.eq.s32.totalorder %s15, 1
    %p137 = por %p135, %p136
    %p138 = scmp.ne.s32.totalorder %s127, %s128
    %p139 = scmp.eq.s32.totalorder %s15, 0
    %p140 = por %p138, %p139
    %p141 = scmp.ne.s32.totalorder %s127, %s128
    %p142 = scmp.eq.s32.totalorder %s16, 1
    %p143 = por %p141, %p142
    %p145 = scmp.ne.s32.totalorder %s128, %s144
    %p146 = scmp.eq.s32.totalorder %s16, 0
    %p147 = por %p145, %p146
    %p148 = scmp.le.s32.totalorder 1, %s10
    %p149 = scmp.lt.s32.totalorder %s10, 3
    %p150 = pnand %p148, %p149
    %p151 = pneg %p150
    // Predicated region
    $region9: #{_decoder_stack.19} parent=5 // pred_check
      _
    $region10: #{_decoder_stack.19} parent=5 // pred_check_branch
      %153 = sbr.rel (%p150) target = $region12
    $region11: #{_decoder_stack.19} parent=5 // pred_region
      %s154 = ssub.s32 %s10, 1
    $region12: #{_decoder_stack.19} parent=5 // pred_fallthru
      _
    %p155 = scmp.lt.s32.totalorder %s10, 2
    // Predicated region
    $region13: #{_decoder_stack.19} parent=5 // pred_check
      %p156 = pneg %p155
    $region14: #{_decoder_stack.19} parent=5 // pred_check_branch
      %158 = sbr.rel (%p156) target = $region16
    $region15: #{_decoder_stack.19} parent=5 // pred_region
      // Predicated region
      $region17: #{_decoder_stack.19} parent=15 // pred_check
        %p159 = pneg %p30
      $region18: #{_decoder_stack.19} parent=15 // pred_check_branch
        %161 = sbr.rel (%p159) target = $region20
      $region19: #{_decoder_stack.19} parent=15 // pred_region
        %p162 = scmp.lt.s32.totalorder %s10, 1
        %s163 = scalar_select %p162, %s10, 1
        %s164 = smul.addr %s163, 8
        %s165 = scalar_lea.vmem %s0, %s164
      $region20: #{_decoder_stack.19} parent=15 // pred_fallthru
        _
      // Predicated region
      $region21: #{_decoder_stack.19} parent=15 // pred_check
        %p166 = pneg %p56
      $region22: #{_decoder_stack.19} parent=15 // pred_check_branch
        %168 = sbr.rel (%p166) target = $region24
      $region23: #{_decoder_stack.19} parent=15 // pred_region
        %p169 = scmp.lt.s32.totalorder %s10, 1
        %s170 = scalar_select %p169, %s10, 1
        %s171 = smul.addr %s170, 8
        %s172 = scalar_lea.vmem %s1, %s171
      $region24: #{_decoder_stack.19} parent=15 // pred_fallthru
        _
      // Predicated region
      $region25: #{_decoder_stack.19} parent=15 // pred_check
        %p173 = pneg %p82
      $region26: #{_decoder_stack.19} parent=15 // pred_check_branch
        %175 = sbr.rel (%p173) target = $region28
      $region27: #{_decoder_stack.19} parent=15 // pred_region
        %p176 = scmp.lt.s32.totalorder %s10, 1
        %s177 = scalar_select %p176, %s10, 1
        %s178 = smul.addr %s177, 8
        %s179 = scalar_lea.vmem %s2, %s178
      $region28: #{_decoder_stack.19} parent=15 // pred_fallthru
        _
      // Predicated region
      $region29: #{_decoder_stack.19} parent=15 // pred_check
        %p180 = pneg %p108
      $region30: #{_decoder_stack.19} parent=15 // pred_check_branch
        %182 = sbr.rel (%p180) target = $region32
      $region31: #{_decoder_stack.19} parent=15 // pred_region
        %p183 = scmp.lt.s32.totalorder %s10, 1
        %s184 = scalar_select %p183, %s10, 1
        %s185 = smul.addr %s184, 8
        %s186 = scalar_lea.vmem %s3, %s185
      $region32: #{_decoder_stack.19} parent=15 // pred_fallthru
        _
    $region16: #{_decoder_stack.19} parent=5 // pred_fallthru
      _
    %p187 = scmp.le.s32.totalorder 1, %s10
    %p188 = scmp.lt.s32.totalorder %s10, 3
    %p189 = pnand %p187, %p188
    %p190 = pneg %p189
    // Predicated region
    $region33: #{_decoder_stack.19} parent=5 // pred_check
      _
    $region34: #{_decoder_stack.19} parent=5 // pred_check_branch
      %192 = sbr.rel (%p189) target = $region36
    $region35: #{_decoder_stack.19} parent=5 // pred_region
      %s193 = ssub.s32 %s10, 1
      %p194 = scmp.lt.s32.totalorder %s15, 1
      %s195 = scalar_select %p194, %s15, 1
      %s196 = smul.addr %s195, 8
      %s197 = scalar_lea.vmem %s0, %s196
      %p198 = pneg %p36
      %p199 = pneg %p33
      %p200 = scmp.lt.s32.totalorder %s15, 1
      %s201 = scalar_select %p200, %s15, 1
      %s202 = smul.addr %s201, 8
      %s203 = scalar_lea.vmem %s1, %s202
      %p204 = pneg %p62
      %p205 = pneg %p59
      %p206 = scmp.lt.s32.totalorder %s15, 1
      %s207 = scalar_select %p206, %s15, 1
      %s208 = smul.addr %s207, 8
      %s209 = scalar_lea.vmem %s2, %s208
      %p210 = pneg %p88
      %p211 = pneg %p85
      %p212 = scmp.lt.s32.totalorder %s15, 1
      %s213 = scalar_select %p212, %s15, 1
      %s214 = smul.addr %s213, 8
      %s215 = scalar_lea.vmem %s3, %s214
      %p216 = pneg %p114
      %p217 = pneg %p111
      %p218 = pneg %p140
      %p219 = pneg %p137
      %p220 = scmp.lt.s32.totalorder %s15, 1
      %s221 = scalar_select %p220, %s15, 1
      %s222 = smul.addr %s221, 8
      %s223 = scalar_lea.vmem %s4, %s222
      %p224 = scmp.lt.s32.totalorder %s15, 1
      %s225 = scalar_select %p224, %s15, 1
      %s226 = smul.addr %s225, 8
      %s227 = scalar_lea.vmem %s0, %s226
      %p228 = scmp.lt.s32.totalorder %s15, 1
      %s229 = scalar_select %p228, %s15, 1
      %s230 = smul.addr %s229, 8
      %s231 = scalar_lea.vmem %s1, %s230
      %p232 = scmp.lt.s32.totalorder %s15, 1
      %s233 = scalar_select %p232, %s15, 1
      %s234 = smul.addr %s233, 8
      %s235 = scalar_lea.vmem %s2, %s234
      %p236 = scmp.lt.s32.totalorder %s15, 1
      %s237 = scalar_select %p236, %s15, 1
      %s238 = smul.addr %s237, 8
      %s239 = scalar_lea.vmem %s3, %s238
      %p240 = scmp.lt.s32.totalorder %s15, 1
      %s241 = scalar_select %p240, %s15, 1
      %s242 = smul.addr %s241, 8
      %s243 = scalar_lea.vmem %s4, %s242
      %v245 = vld [vmem:[%s227] sm:$0xff]
      %v246 = vmul.f32 %v245, 0.35355338
      %v247 = vld [vmem:[%s231] sm:$0xff]
      %v248 = vld [vmem:[%s235] sm:$0xff]
      %v249 = vld [vmem:[%s239] sm:$0xff]
      %v250 = vpack.c.bf16 %v246, %v246
      %v251 = vpack.c.bf16 %v247, %v247
      %v252 = vpack.c.bf16 %v248, %v248
      %vm253 = vcmask 64512
      %v255 = vsel %vm253, %v250, 0
      %v258 = vsel %vm253, %v251, 0
      %260 = vmatprep.subr.bf16.mxu0 0
      %261 = vmatpush1.bf16.xpose.msra.mxu0 %v258
      %262 = vmatprep.subr.bf16.mxu0 0
      %263 = vmatpush1.bf16.xpose.msra.mxu0 0
      %264 = vmatprep.subr.bf16.mxu0 0
      %265 = vmatpush1.bf16.xpose.msra.mxu0 0
      %266 = vmatprep.subr.bf16.mxu0 0
      %267 = vmatpush1.bf16.xpose.msra.mxu0 0
      %268 = vmatprep.subr.bf16.mxu0 0
      %269 = vmatpush1.bf16.xpose.msra.mxu0 0
      %270 = vmatprep.subr.bf16.mxu0 0
      %271 = vmatpush1.bf16.xpose.msra.mxu0 0
      %272 = vmatprep.subr.bf16.mxu0 0
      %273 = vmatpush1.bf16.xpose.msra.mxu0 0
      %274 = vmatprep.subr.bf16.mxu0 0
      %275 = vmatpush1.bf16.xpose.msra.mxu0 0
      %276 = vmatprep.subr.bf16.mxu0 0
      %277 = vmatpush1.bf16.xpose.msra.mxu0 0
      %278 = vmatprep.subr.bf16.mxu0 0
      %279 = vmatpush1.bf16.xpose.msra.mxu0 0
      %280 = vmatprep.subr.bf16.mxu0 0
      %281 = vmatpush1.bf16.xpose.msra.mxu0 0
      %282 = vmatprep.subr.bf16.mxu0 0
      %283 = vmatpush1.bf16.xpose.msra.mxu0 0
      %284 = vmatprep.subr.bf16.mxu0 0
      %285 = vmatpush1.bf16.xpose.msra.mxu0 0
      %286 = vmatprep.subr.bf16.mxu0 0
      %287 = vmatpush1.bf16.xpose.msra.mxu0 0
      %288 = vmatprep.subr.bf16.mxu0 0
      %289 = vmatpush1.bf16.xpose.msra.mxu0 0
      %290 = vmatprep.subr.bf16.mxu0 0
      %291 = vmatpush1.bf16.xpose.msra.mxu0 0
      %292 = vmatprep.mubr.bf16.mxu0 0
      %293 = vmatmul.mubr.bf16.gmra.mrb[0].mxu0 %v255
      %v294 = vpop.f32.mrb[0].mxu0
      %v295 = vadd.f32 %v249, %v294
      %v296 = vpop.f32.mrb[0].mxu0
      %v297 = vpop.f32.mrb[0].mxu0
      %v298 = vpop.f32.mrb[0].mxu0
      %299 = vdwg.mxu0
      %v300 = vsel %vm253, %v295, -inf
      %301 = vmax.xlane.f32.xlu0 %v300
      %v302 = vpop.xlane.xlu0 %301
      %v303 = vsub.f32 %v295, %v302
      %v304 = vmul.f32 %v303, 1.442695
      %v305 = vpow.pop %v304
      %v306 = vsel %vm253, %v305, 0.0
      %307 = vadd.xlane.f32.xlu0 %v306
      %v308 = vpop.xlane.xlu0 %307
      %v309 = vrcp.pop %v308
      %v310 = vmul.f32 %v305, %v309
      %v311 = vpack.c.bf16 %v310, %v310
      %v313 = vsel %vm253, %v311, 0
      %vm315 = vcmask 1043456
      %v317 = vsel %vm315, %v252, 0
      %319 = vmatprep.subr.bf16.mxu0 0
      %320 = vmatpush1.bf16.msra.mxu0 %v317
      %321 = vmatprep.subr.bf16.mxu0 0
      %322 = vmatpush1.bf16.msra.mxu0 0
      %323 = vmatprep.subr.bf16.mxu0 0
      %324 = vmatpush1.bf16.msra.mxu0 0
      %325 = vmatprep.subr.bf16.mxu0 0
      %326 = vmatpush1.bf16.msra.mxu0 0
      %327 = vmatprep.subr.bf16.mxu0 0
      %328 = vmatpush1.bf16.msra.mxu0 0
      %329 = vmatprep.subr.bf16.mxu0 0
      %330 = vmatpush1.bf16.msra.mxu0 0
      %331 = vmatprep.subr.bf16.mxu0 0
      %332 = vmatpush1.bf16.msra.mxu0 0
      %333 = vmatprep.subr.bf16.mxu0 0
      %334 = vmatpush1.bf16.msra.mxu0 0
      %335 = vmatprep.subr.bf16.mxu0 0
      %336 = vmatpush1.bf16.msra.mxu0 0
      %337 = vmatprep.subr.bf16.mxu0 0
      %338 = vmatpush1.bf16.msra.mxu0 0
      %339 = vmatprep.subr.bf16.mxu0 0
      %340 = vmatpush1.bf16.msra.mxu0 0
      %341 = vmatprep.subr.bf16.mxu0 0
      %342 = vmatpush1.bf16.msra.mxu0 0
      %343 = vmatprep.subr.bf16.mxu0 0
      %344 = vmatpush1.bf16.msra.mxu0 0
      %345 = vmatprep.subr.bf16.mxu0 0
      %346 = vmatpush1.bf16.msra.mxu0 0
      %347 = vmatprep.subr.bf16.mxu0 0
      %348 = vmatpush1.bf16.msra.mxu0 0
      %349 = vmatprep.subr.bf16.mxu0 0
      %350 = vmatpush1.bf16.msra.mxu0 0
      %351 = vmatprep.mubr.bf16.mxu0 0
      %352 = vmatmul.mubr.bf16.gmra.mrb[0].mxu0 %v313
      %v353 = vpop.f32.mrb[0].mxu0
      %v354 = vadd.f32 0.0, %v353
      %v355 = vpop.f32.mrb[0].mxu0
      %v356 = vpop.f32.mrb[0].mxu0
      %v357 = vpop.f32.mrb[0].mxu0
      %358 = vdwg.mxu0
      %360 = vrot.lane.b32.xlu0 %v250, 120
      %v361 = vpop.permute.xlu0 %360
      %363 = vrot.lane.b32.xlu0 %v251, 120
      %v364 = vpop.permute.xlu0 %363
      %v366 = vsel %vm253, %v361, 0
      %v369 = vsel %vm253, %v364, 0
      %371 = vmatprep.subr.bf16.mxu0 0
      %372 = vmatpush1.bf16.xpose.msra.mxu0 %v369
      %373 = vmatprep.subr.bf16.mxu0 0
      %374 = vmatpush1.bf16.xpose.msra.mxu0 0
      %375 = vmatprep.subr.bf16.mxu0 0
      %376 = vmatpush1.bf16.xpose.msra.mxu0 0
      %377 = vmatprep.subr.bf16.mxu0 0
      %378 = vmatpush1.bf16.xpose.msra.mxu0 0
      %379 = vmatprep.subr.bf16.mxu0 0
      %380 = vmatpush1.bf16.xpose.msra.mxu0 0
      %381 = vmatprep.subr.bf16.mxu0 0
      %382 = vmatpush1.bf16.xpose.msra.mxu0 0
      %383 = vmatprep.subr.bf16.mxu0 0
      %384 = vmatpush1.bf16.xpose.msra.mxu0 0
      %385 = vmatprep.subr.bf16.mxu0 0
      %386 = vmatpush1.bf16.xpose.msra.mxu0 0
      %387 = vmatprep.subr.bf16.mxu0 0
      %388 = vmatpush1.bf16.xpose.msra.mxu0 0
      %389 = vmatprep.subr.bf16.mxu0 0
      %390 = vmatpush1.bf16.xpose.msra.mxu0 0
      %391 = vmatprep.subr.bf16.mxu0 0
      %392 = vmatpush1.bf16.xpose.msra.mxu0 0
      %393 = vmatprep.subr.bf16.mxu0 0
      %394 = vmatpush1.bf16.xpose.msra.mxu0 0
      %395 = vmatprep.subr.bf16.mxu0 0
      %396 = vmatpush1.bf16.xpose.msra.mxu0 0
      %397 = vmatprep.subr.bf16.mxu0 0
      %398 = vmatpush1.bf16.xpose.msra.mxu0 0
      %399 = vmatprep.subr.bf16.mxu0 0
      %400 = vmatpush1.bf16.xpose.msra.mxu0 0
      %401 = vmatprep.subr.bf16.mxu0 0
      %402 = vmatpush1.bf16.xpose.msra.mxu0 0
      %403 = vmatprep.mubr.bf16.mxu0 0
      %404 = vmatmul.mubr.bf16.gmra.mrb[0].mxu0 %v366
      %v405 = vpop.f32.mrb[0].mxu0
      %v406 = vadd.f32 %v249, %v405
      %v407 = vpop.f32.mrb[0].mxu0
      %v408 = vpop.f32.mrb[0].mxu0
      %v409 = vpop.f32.mrb[0].mxu0
      %410 = vdwg.mxu0
      %v411 = vsel %vm253, %v406, -inf
      %412 = vmax.xlane.f32.xlu0 %v411
      %v413 = vpop.xlane.xlu0 %412
      %v414 = vsub.f32 %v406, %v413
      %v415 = vmul.f32 %v414, 1.442695
      %v416 = vpow.pop %v415
      %v417 = vsel %vm253, %v416, 0.0
      %418 = vadd.xlane.f32.xlu0 %v417
      %v419 = vpop.xlane.xlu0 %418
      %v420 = vrcp.pop %v419
      %v421 = vmul.f32 %v416, %v420
      %v422 = vpack.c.bf16 %v421, %v421
      %424 = vrot.lane.b32.xlu0 %v252, 120
      %v425 = vpop.permute.xlu0 %424
      %v427 = vsel %vm253, %v422, 0
      %v430 = vsel %vm315, %v425, 0
      %432 = vmatprep.subr.bf16.mxu0 0
      %433 = vmatpush1.bf16.msra.mxu0 %v430
      %434 = vmatprep.subr.bf16.mxu0 0
      %435 = vmatpush1.bf16.msra.mxu0 0
      %436 = vmatprep.subr.bf16.mxu0 0
      %437 = vmatpush1.bf16.msra.mxu0 0
      %438 = vmatprep.subr.bf16.mxu0 0
      %439 = vmatpush1.bf16.msra.mxu0 0
      %440 = vmatprep.subr.bf16.mxu0 0
      %441 = vmatpush1.bf16.msra.mxu0 0
      %442 = vmatprep.subr.bf16.mxu0 0
      %443 = vmatpush1.bf16.msra.mxu0 0
      %444 = vmatprep.subr.bf16.mxu0 0
      %445 = vmatpush1.bf16.msra.mxu0 0
      %446 = vmatprep.subr.bf16.mxu0 0
      %447 = vmatpush1.bf16.msra.mxu0 0
      %448 = vmatprep.subr.bf16.mxu0 0
      %449 = vmatpush1.bf16.msra.mxu0 0
      %450 = vmatprep.subr.bf16.mxu0 0
      %451 = vmatpush1.bf16.msra.mxu0 0
      %452 = vmatprep.subr.bf16.mxu0 0
      %453 = vmatpush1.bf16.msra.mxu0 0
      %454 = vmatprep.subr.bf16.mxu0 0
      %455 = vmatpush1.bf16.msra.mxu0 0
      %456 = vmatprep.subr.bf16.mxu0 0
      %457 = vmatpush1.bf16.msra.mxu0 0
      %458 = vmatprep.subr.bf16.mxu0 0
      %459 = vmatpush1.bf16.msra.mxu0 0
      %460 = vmatprep.subr.bf16.mxu0 0
      %461 = vmatpush1.bf16.msra.mxu0 0
      %462 = vmatprep.subr.bf16.mxu0 0
      %463 = vmatpush1.bf16.msra.mxu0 0
      %464 = vmatprep.mubr.bf16.mxu0 0
      %465 = vmatmul.mubr.bf16.gmra.mrb[0].mxu0 %v427
      %v466 = vpop.f32.mrb[0].mxu0
      %v467 = vadd.f32 0.0, %v466
      %v468 = vpop.f32.mrb[0].mxu0
      %v469 = vpop.f32.mrb[0].mxu0
      %v470 = vpop.f32.mrb[0].mxu0
      %471 = vdwg.mxu0
      %472 = vrot.lane.b32.xlu0 %v250, 112
      %v473 = vpop.permute.xlu0 %472
      %474 = vrot.lane.b32.xlu0 %v251, 112
      %v475 = vpop.permute.xlu0 %474
      %v477 = vsel %vm253, %v473, 0
      %v480 = vsel %vm253, %v475, 0
      %482 = vmatprep.subr.bf16.mxu0 0
      %483 = vmatpush1.bf16.xpose.msra.mxu0 %v480
      %484 = vmatprep.subr.bf16.mxu0 0
      %485 = vmatpush1.bf16.xpose.msra.mxu0 0
      %486 = vmatprep.subr.bf16.mxu0 0
      %487 = vmatpush1.bf16.xpose.msra.mxu0 0
      %488 = vmatprep.subr.bf16.mxu0 0
      %489 = vmatpush1.bf16.xpose.msra.mxu0 0
      %490 = vmatprep.subr.bf16.mxu0 0
      %491 = vmatpush1.bf16.xpose.msra.mxu0 0
      %492 = vmatprep.subr.bf16.mxu0 0
      %493 = vmatpush1.bf16.xpose.msra.mxu0 0
      %494 = vmatprep.subr.bf16.mxu0 0
      %495 = vmatpush1.bf16.xpose.msra.mxu0 0
      %496 = vmatprep.subr.bf16.mxu0 0
      %497 = vmatpush1.bf16.xpose.msra.mxu0 0
      %498 = vmatprep.subr.bf16.mxu0 0
      %499 = vmatpush1.bf16.xpose.msra.mxu0 0
      %500 = vmatprep.subr.bf16.mxu0 0
      %501 = vmatpush1.bf16.xpose.msra.mxu0 0
      %502 = vmatprep.subr.bf16.mxu0 0
      %503 = vmatpush1.bf16.xpose.msra.mxu0 0
      %504 = vmatprep.subr.bf16.mxu0 0
      %505 = vmatpush1.bf16.xpose.msra.mxu0 0
      %506 = vmatprep.subr.bf16.mxu0 0
      %507 = vmatpush1.bf16.xpose.msra.mxu0 0
      %508 = vmatprep.subr.bf16.mxu0 0
      %509 = vmatpush1.bf16.xpose.msra.mxu0 0
      %510 = vmatprep.subr.bf16.mxu0 0
      %511 = vmatpush1.bf16.xpose.msra.mxu0 0
      %512 = vmatprep.subr.bf16.mxu0 0
      %513 = vmatpush1.bf16.xpose.msra.mxu0 0
      %514 = vmatprep.mubr.bf16.mxu0 0
      %515 = vmatmul.mubr.bf16.gmra.mrb[0].mxu0 %v477
      %v516 = vpop.f32.mrb[0].mxu0
      %v517 = vadd.f32 %v249, %v516
      %v518 = vpop.f32.mrb[0].mxu0
      %v519 = vpop.f32.mrb[0].mxu0
      %v520 = vpop.f32.mrb[0].mxu0
      %521 = vdwg.mxu0
      %v522 = vsel %vm253, %v517, -inf
      %523 = vmax.xlane.f32.xlu0 %v522
      %v524 = vpop.xlane.xlu0 %523
      %v525 = vsub.f32 %v517, %v524
      %v526 = vmul.f32 %v525, 1.442695
      %v527 = vpow.pop %v526
      %v528 = vsel %vm253, %v527, 0.0
      %529 = vadd.xlane.f32.xlu0 %v528
      %v530 = vpop.xlane.xlu0 %529
      %v531 = vrcp.pop %v530
      %v532 = vmul.f32 %v527, %v531
      %v533 = vpack.c.bf16 %v532, %v532
      %534 = vrot.lane.b32.xlu0 %v252, 112
      %v535 = vpop.permute.xlu0 %534
      %v537 = vsel %vm253, %v533, 0
      %v540 = vsel %vm315, %v535, 0
      %542 = vmatprep.subr.bf16.mxu0 0
      %543 = vmatpush1.bf16.msra.mxu0 %v540
      %544 = vmatprep.subr.bf16.mxu0 0
      %545 = vmatpush1.bf16.msra.mxu0 0
      %546 = vmatprep.subr.bf16.mxu0 0
      %547 = vmatpush1.bf16.msra.mxu0 0
      %548 = vmatprep.subr.bf16.mxu0 0
      %549 = vmatpush1.bf16.msra.mxu0 0
      %550 = vmatprep.subr.bf16.mxu0 0
      %551 = vmatpush1.bf16.msra.mxu0 0
      %552 = vmatprep.subr.bf16.mxu0 0
      %553 = vmatpush1.bf16.msra.mxu0 0
      %554 = vmatprep.subr.bf16.mxu0 0
      %555 = vmatpush1.bf16.msra.mxu0 0
      %556 = vmatprep.subr.bf16.mxu0 0
      %557 = vmatpush1.bf16.msra.mxu0 0
      %558 = vmatprep.subr.bf16.mxu0 0
      %559 = vmatpush1.bf16.msra.mxu0 0
      %560 = vmatprep.subr.bf16.mxu0 0
      %561 = vmatpush1.bf16.msra.mxu0 0
      %562 = vmatprep.subr.bf16.mxu0 0
      %563 = vmatpush1.bf16.msra.mxu0 0
      %564 = vmatprep.subr.bf16.mxu0 0
      %565 = vmatpush1.bf16.msra.mxu0 0
      %566 = vmatprep.subr.bf16.mxu0 0
      %567 = vmatpush1.bf16.msra.mxu0 0
      %568 = vmatprep.subr.bf16.mxu0 0
      %569 = vmatpush1.bf16.msra.mxu0 0
      %570 = vmatprep.subr.bf16.mxu0 0
      %571 = vmatpush1.bf16.msra.mxu0 0
      %572 = vmatprep.subr.bf16.mxu0 0
      %573 = vmatpush1.bf16.msra.mxu0 0
      %574 = vmatprep.mubr.bf16.mxu0 0
      %575 = vmatmul.mubr.bf16.gmra.mrb[0].mxu0 %v537
      %v576 = vpop.f32.mrb[0].mxu0
      %v577 = vadd.f32 0.0, %v576
      %v578 = vpop.f32.mrb[0].mxu0
      %v579 = vpop.f32.mrb[0].mxu0
      %v580 = vpop.f32.mrb[0].mxu0
      %581 = vdwg.mxu0
      %582 = vrot.lane.b32.xlu0 %v250, 104
      %v583 = vpop.permute.xlu0 %582
      %584 = vrot.lane.b32.xlu0 %v251, 104
      %v585 = vpop.permute.xlu0 %584
      %v587 = vsel %vm253, %v583, 0
      %v590 = vsel %vm253, %v585, 0
      %592 = vmatprep.subr.bf16.mxu0 0
      %593 = vmatpush1.bf16.xpose.msra.mxu0 %v590
      %594 = vmatprep.subr.bf16.mxu0 0
      %595 = vmatpush1.bf16.xpose.msra.mxu0 0
      %596 = vmatprep.subr.bf16.mxu0 0
      %597 = vmatpush1.bf16.xpose.msra.mxu0 0
      %598 = vmatprep.subr.bf16.mxu0 0
      %599 = vmatpush1.bf16.xpose.msra.mxu0 0
      %600 = vmatprep.subr.bf16.mxu0 0
      %601 = vmatpush1.bf16.xpose.msra.mxu0 0
      %602 = vmatprep.subr.bf16.mxu0 0
      %603 = vmatpush1.bf16.xpose.msra.mxu0 0
      %604 = vmatprep.subr.bf16.mxu0 0
      %605 = vmatpush1.bf16.xpose.msra.mxu0 0
      %606 = vmatprep.subr.bf16.mxu0 0
      %607 = vmatpush1.bf16.xpose.msra.mxu0 0
      %608 = vmatprep.subr.bf16.mxu0 0
      %609 = vmatpush1.bf16.xpose.msra.mxu0 0
      %610 = vmatprep.subr.bf16.mxu0 0
      %611 = vmatpush1.bf16.xpose.msra.mxu0 0
      %612 = vmatprep.subr.bf16.mxu0 0
      %613 = vmatpush1.bf16.xpose.msra.mxu0 0
      %614 = vmatprep.subr.bf16.mxu0 0
      %615 = vmatpush1.bf16.xpose.msra.mxu0 0
      %616 = vmatprep.subr.bf16.mxu0 0
      %617 = vmatpush1.bf16.xpose.msra.mxu0 0
      %618 = vmatprep.subr.bf16.mxu0 0
      %619 = vmatpush1.bf16.xpose.msra.mxu0 0
      %620 = vmatprep.subr.bf16.mxu0 0
      %621 = vmatpush1.bf16.xpose.msra.mxu0 0
      %622 = vmatprep.subr.bf16.mxu0 0
      %623 = vmatpush1.bf16.xpose.msra.mxu0 0
      %624 = vmatprep.mubr.bf16.mxu0 0
      %625 = vmatmul.mubr.bf16.gmra.mrb[0].mxu0 %v587
      %v626 = vpop.f32.mrb[0].mxu0
      %v627 = vadd.f32 %v249, %v626
      %v628 = vpop.f32.mrb[0].mxu0
      %v629 = vpop.f32.mrb[0].mxu0
      %v630 = vpop.f32.mrb[0].mxu0
      %631 = vdwg.mxu0
      %v632 = vsel %vm253, %v627, -inf
      %633 = vmax.xlane.f32.xlu0 %v632
      %v634 = vpop.xlane.xlu0 %633
      %v635 = vsub.f32 %v627, %v634
      %v636 = vmul.f32 %v635, 1.442695
      %v637 = vpow.pop %v636
      %v638 = vsel %vm253, %v637, 0.0
      %639 = vadd.xlane.f32.xlu0 %v638
      %v640 = vpop.xlane.xlu0 %639
      %v641 = vrcp.pop %v640
      %v642 = vmul.f32 %v637, %v641
      %v643 = vpack.c.bf16 %v642, %v642
      %644 = vrot.lane.b32.xlu0 %v252, 104
      %v645 = vpop.permute.xlu0 %644
      %v647 = vsel %vm253, %v643, 0
      %v650 = vsel %vm315, %v645, 0
      %652 = vmatprep.subr.bf16.mxu0 0
      %653 = vmatpush1.bf16.msra.mxu0 %v650
      %654 = vmatprep.subr.bf16.mxu0 0
      %655 = vmatpush1.bf16.msra.mxu0 0
      %656 = vmatprep.subr.bf16.mxu0 0
      %657 = vmatpush1.bf16.msra.mxu0 0
      %658 = vmatprep.subr.bf16.mxu0 0
      %659 = vmatpush1.bf16.msra.mxu0 0
      %660 = vmatprep.subr.bf16.mxu0 0
      %661 = vmatpush1.bf16.msra.mxu0 0
      %662 = vmatprep.subr.bf16.mxu0 0
      %663 = vmatpush1.bf16.msra.mxu0 0
      %664 = vmatprep.subr.bf16.mxu0 0
      %665 = vmatpush1.bf16.msra.mxu0 0
      %666 = vmatprep.subr.bf16.mxu0 0
      %667 = vmatpush1.bf16.msra.mxu0 0
      %668 = vmatprep.subr.bf16.mxu0 0
      %669 = vmatpush1.bf16.msra.mxu0 0
      %670 = vmatprep.subr.bf16.mxu0 0
      %671 = vmatpush1.bf16.msra.mxu0 0
      %672 = vmatprep.subr.bf16.mxu0 0
      %673 = vmatpush1.bf16.msra.mxu0 0
      %674 = vmatprep.subr.bf16.mxu0 0
      %675 = vmatpush1.bf16.msra.mxu0 0
      %676 = vmatprep.subr.bf16.mxu0 0
      %677 = vmatpush1.bf16.msra.mxu0 0
      %678 = vmatprep.subr.bf16.mxu0 0
      %679 = vmatpush1.bf16.msra.mxu0 0
      %680 = vmatprep.subr.bf16.mxu0 0
      %681 = vmatpush1.bf16.msra.mxu0 0
      %682 = vmatprep.subr.bf16.mxu0 0
      %683 = vmatpush1.bf16.msra.mxu0 0
      %684 = vmatprep.mubr.bf16.mxu0 0
      %685 = vmatmul.mubr.bf16.gmra.mrb[0].mxu0 %v647
      %v686 = vpop.f32.mrb[0].mxu0
      %v687 = vadd.f32 0.0, %v686
      %v688 = vpop.f32.mrb[0].mxu0
      %v689 = vpop.f32.mrb[0].mxu0
      %v690 = vpop.f32.mrb[0].mxu0
      %691 = vdwg.mxu0
      %693 = vrot.lane.b32.xlu0 %v467, 8
      %v694 = vpop.permute.xlu0 %693
      %697 = vrot.lane.b32.xlu0 %v577, 16
      %v698 = vpop.permute.xlu0 %697
      %701 = vrot.lane.b32.xlu0 %v687, 24
      %v702 = vpop.permute.xlu0 %701
      %v704 = vsel %vm253, %v354, %v694
      %vm705 = vcmask 130048
      %v706 = vsel %vm705, %v704, %v698
      %vm707 = vcmask 195584
      %v708 = vsel %vm707, %v706, %v702
      %vm709 = vcmask 261120
      %710 = vst.msk [vmem:[%s243] sm:$0xff] %vm709, %v708
      %p711 = scmp.lt.s32.totalorder %s15, 1
      %s712 = scalar_select %p711, %s15, 1
      %s713 = smul.addr %s712, 8
      %s714 = scalar_lea.vmem %s4, %s713
      // Predicated region
      $region37: #{_decoder_stack.19} parent=35 // pred_check
        %p715 = pneg %p137
      $region38: #{_decoder_stack.19} parent=35 // pred_check_branch
        %717 = sbr.rel (%p715) target = $region40
      $region39: #{_decoder_stack.19} parent=35 // pred_region
        _
      $region40: #{_decoder_stack.19} parent=35 // pred_fallthru
        _
    $region36: #{_decoder_stack.19} parent=5 // pred_fallthru
      _
    %p718 = scmp.le.s32.totalorder 2, %s10
    // Predicated region
    $region41: #{_decoder_stack.19} parent=5 // pred_check
      %p719 = pneg %p718
    $region42: #{_decoder_stack.19} parent=5 // pred_check_branch
      %721 = sbr.rel (%p719) target = $region44
    $region43: #{_decoder_stack.19} parent=5 // pred_region
      %s722 = ssub.s32 %s10, 2
      // Predicated region
      $region45: #{_decoder_stack.19} parent=43 // pred_check
        %p723 = pneg %p143
      $region46: #{_decoder_stack.19} parent=43 // pred_check_branch
        %725 = sbr.rel (%p723) target = $region48
      $region47: #{_decoder_stack.19} parent=43 // pred_region
        %p726 = scmp.lt.s32.totalorder %s16, 1
        %s727 = scalar_select %p726, %s16, 1
        %s728 = smul.addr %s727, 8
        %s729 = scalar_lea.vmem %s4, %s728
      $region48: #{_decoder_stack.19} parent=43 // pred_fallthru
        _
    $region44: #{_decoder_stack.19} parent=5 // pred_fallthru
      _
  $region6: #{_decoder_stack.19} parent=0 // loop_footer
    %s14 = sadd.s32 1, %s10
  $region7: #{_decoder_stack.19} parent=0 // loop_footer_branch
    %9 = sbr.rel target = $region3
  $region8: #{_decoder_stack.19} parent=0 // loop_exit
    _

// kernel: _decoder_stack.20
$region0: #{_decoder_stack.20}
  #allocation0 [shape = 'u32[]', space=smem, size = 0x4, offset = 0x4, fixed_abs, tag = 'smem constant byte address 0x4 - core index']
  #allocation1 [shape = 'u32[144,128]{1,0:T(1,128)}', space=vmem, size = 0x12000, scoped, tag = 'internal scratch']
  %s0 = inlined_call_operand.vmem [shape: f32[16,32], index: 0, kind: input, shape index: {}]
  %s1 = inlined_call_operand.vmem [shape: f32[32,32], index: 1, kind: input, shape index: {}]
  %s2 = inlined_call_operand.vmem [shape: f32[1,32], index: 2, kind: input, shape index: {}]
  %s3 = inlined_call_operand.vmem [shape: f32[16,32], index: 3, kind: input, shape index: {}]
  %s4 = inlined_call_operand.vmem [shape: f32[1,32], index: 4, kind: input, shape index: {}]
  %s5 = inlined_call_operand.vmem [shape: f32[1,32], index: 5, kind: input, shape index: {}]
  %s6 = inlined_call_operand.vmem [shape: f32[16,32], index: 6, kind: output, shape index: {}]
  %s7 = sld [smem:[#allocation0]]
  $region34: #{_decoder_stack.20} parent=0
    _
  %s9 = ssub.s32 1, %s7
  %s10 = scalar_select 0, %s9, %s7
  // Predicated region
  $region2: #{_decoder_stack.20} parent=0 // pred_check
    _
  $region3: #{_decoder_stack.20} parent=0 // pred_check_branch
    %12 = sbr.rel (0) target = $region5
  $region4: #{_decoder_stack.20} parent=0 // pred_region
    _
  $region5: #{_decoder_stack.20} parent=0 // pred_fallthru
    _
  // Predicated region
  $region6: #{_decoder_stack.20} parent=0 // pred_check
    _
  $region7: #{_decoder_stack.20} parent=0 // pred_check_branch
    %14 = sbr.rel (0) target = $region9
  $region8: #{_decoder_stack.20} parent=0 // pred_region
    _
  $region9: #{_decoder_stack.20} parent=0 // pred_fallthru
    _
  // Predicated region
  $region10: #{_decoder_stack.20} parent=0 // pred_check
    _
  $region11: #{_decoder_stack.20} parent=0 // pred_check_branch
    %16 = sbr.rel (0) target = $region13
  $region12: #{_decoder_stack.20} parent=0 // pred_region
    _
  $region13: #{_decoder_stack.20} parent=0 // pred_fallthru
    _
  // Predicated region
  $region14: #{_decoder_stack.20} parent=0 // pred_check
    _
  $region15: #{_decoder_stack.20} parent=0 // pred_check_branch
    %18 = sbr.rel (0) target = $region17
  $region16: #{_decoder_stack.20} parent=0 // pred_region
    _
  $region17: #{_decoder_stack.20} parent=0 // pred_fallthru
    _
  // Predicated region
  $region18: #{_decoder_stack.20} parent=0 // pred_check
    _
  $region19: #{_decoder_stack.20} parent=0 // pred_check_branch
    %20 = sbr.rel (0) target = $region21
  $region20: #{_decoder_stack.20} parent=0 // pred_region
    _
  $region21: #{_decoder_stack.20} parent=0 // pred_fallthru
    _
  // Predicated region
  $region22: #{_decoder_stack.20} parent=0 // pred_check
    _
  $region23: #{_decoder_stack.20} parent=0 // pred_check_branch
    %22 = sbr.rel (0) target = $region25
  $region24: #{_decoder_stack.20} parent=0 // pred_region
    _
  $region25: #{_decoder_stack.20} parent=0 // pred_fallthru
    _
  %v24 = vld [vmem:[%s0] sm:$0xff]
  %v25 = vld [vmem:[%s0 + $0x8] sm:$0xff]
  %v26 = vpack.c.bf16 %v25, %v24
  %v27 = vld [vmem:[%s1] sm:$0xff]
  %v28 = vld [vmem:[%s1 + $0x8] sm:$0xff]
  %v29 = vld [vmem:[%s1 + $0x10] sm:$0xff]
  %v30 = vld [vmem:[%s1 + $0x18] sm:$0xff]
  %v31 = vpack.c.bf16 %v28, %v27
  %v32 = vpack.c.bf16 %v30, %v29
  %v33 = vld [vmem:[%s2] sm:$0x1]
  %v35 = vlaneseq
  %v36 = vshrl.u32 %v35, 7
  %v37 = vsub.s32 0, %v36
  %v38 = vrot.slane %v33, %v37
  %vm40 = vcmask 261120
  %v42 = vsel %vm40, %v26, 0
  %44 = vmatprep.subr.bf16.mxu0 0
  %45 = vmatpush1.bf16.msra.mxu0 %v31
  %46 = vmatprep.subr.bf16.mxu0 0
  %47 = vmatpush1.bf16.msra.mxu0 %v32
  %48 = vmatprep.subr.bf16.mxu0 0
  %49 = vmatpush1.bf16.msra.mxu0 0
  %50 = vmatprep.subr.bf16.mxu0 0
  %51 = vmatpush1.bf16.msra.mxu0 0
  %52 = vmatprep.subr.bf16.mxu0 0
  %53 = vmatpush1.bf16.msra.mxu0 0
  %54 = vmatprep.subr.bf16.mxu0 0
  %55 = vmatpush1.bf16.msra.mxu0 0
  %56 = vmatprep.subr.bf16.mxu0 0
  %57 = vmatpush1.bf16.msra.mxu0 0
  %58 = vmatprep.subr.bf16.mxu0 0
  %59 = vmatpush1.bf16.msra.mxu0 0
  %60 = vmatprep.subr.bf16.mxu0 0
  %61 = vmatpush1.bf16.msra.mxu0 0
  %62 = vmatprep.subr.bf16.mxu0 0
  %63 = vmatpush1.bf16.msra.mxu0 0
  %64 = vmatprep.subr.bf16.mxu0 0
  %65 = vmatpush1.bf16.msra.mxu0 0
  %66 = vmatprep.subr.bf16.mxu0 0
  %67 = vmatpush1.bf16.msra.mxu0 0
  %68 = vmatprep.subr.bf16.mxu0 0
  %69 = vmatpush1.bf16.msra.mxu0 0
  %70 = vmatprep.subr.bf16.mxu0 0
  %71 = vmatpush1.bf16.msra.mxu0 0
  %72 = vmatprep.subr.bf16.mxu0 0
  %73 = vmatpush1.bf16.msra.mxu0 0
  %74 = vmatprep.subr.bf16.mxu0 0
  %75 = vmatpush1.bf16.msra.mxu0 0
  %76 = vmatprep.mubr.bf16.mxu0 0
  %77 = vmatmul.mubr.bf16.gmra.mrb[0].mxu0 %v42
  %v78 = vpop.f32.mrb[0].mxu0
  %v79 = vadd.f32 %v38, %v78
  %v80 = vpop.f32.mrb[0].mxu0
  %v81 = vpop.f32.mrb[0].mxu0
  %v82 = vadd.f32 %v38, %v81
  %v83 = vpop.f32.mrb[0].mxu0
  %84 = vdwg.mxu0
  %v85 = vld [vmem:[%s3] sm:$0xff]
  %v86 = vld [vmem:[%s3 + $0x8] sm:$0xff]
  %v87 = vadd.f32 %v79, %v85
  %v88 = vadd.f32 %v82, %v86
  %v89 = vsel %vm40, %v87, 0.0
  %90 = vadd.xlane.f32.xlu0 %v89
  %v91 = vpop.xlane.xlu0 %90
  %v92 = vsel %vm40, %v88, 0.0
  %93 = vadd.xlane.f32.xlu0 %v92
  %v94 = vpop.xlane.xlu0 %93
  %v95 = vrcp.pop 32.0
  %v96 = vmul.f32 %v91, %v95
  %v97 = vmul.f32 %v94, %v95
  %v98 = vsub.f32 %v87, %v96
  %v99 = vsub.f32 %v88, %v97
  %v100 = vmul.f32 %v98, %v98
  %v101 = vmul.f32 %v99, %v99
  %v102 = vsel %vm40, %v100, 0.0
  %103 = vadd.xlane.f32.xlu0 %v102
  %v104 = vpop.xlane.xlu0 %103
  %v105 = vsel %vm40, %v101, 0.0
  %106 = vadd.xlane.f32.xlu0 %v105
  %v107 = vpop.xlane.xlu0 %106
  %v108 = vmul.f32 %v104, %v95
  %v109 = vmul.f32 %v107, %v95
  %v110 = vadd.f32 %v108, 1e-05
  %v111 = vadd.f32 %v109, 1e-05
  %v112 = vrsqrt.pop %v110
  %v113 = vrsqrt.pop %v111
  %v114 = vmul.f32 %v98, %v112
  %v115 = vmul.f32 %v99, %v113
  %v116 = vld [vmem:[%s4] sm:$0x1]
  %v118 = vlaneseq
  %v119 = vshrl.u32 %v118, 7
  %v120 = vsub.s32 0, %v119
  %v121 = vrot.slane %v116, %v120
  %v123 = vmul.f32 %v114, %v121
  %v124 = vmul.f32 %v115, %v121
  %v125 = vld [vmem:[%s5] sm:$0x1]
  %v127 = vlaneseq
  %v128 = vshrl.u32 %v127, 7
  %v129 = vsub.s32 0, %v128
  %v130 = vrot.slane %v125, %v129
  %v132 = vadd.f32 %v123, %v130
  %v133 = vadd.f32 %v124, %v130
  %134 = vst.msk [vmem:[%s6] sm:$0xff] %vm40, %v132
  %135 = vst.msk [vmem:[%s6 + $0x8] sm:$0xff] %vm40, %v133
  // Predicated region
  $region26: #{_decoder_stack.20} parent=0 // pred_check
    _
  $region27: #{_decoder_stack.20} parent=0 // pred_check_branch
    %137 = sbr.rel (0) target = $region29
  $region28: #{_decoder_stack.20} parent=0 // pred_region
    _
  $region29: #{_decoder_stack.20} parent=0 // pred_fallthru
    _
  // Predicated region
  $region30: #{_decoder_stack.20} parent=0 // pred_check
    _
  $region31: #{_decoder_stack.20} parent=0 // pred_check_branch
    %139 = sbr.rel (0) target = $region33
  $region32: #{_decoder_stack.20} parent=0 // pred_region
    _
  $region33: #{_decoder_stack.20} parent=0 // pred_fallthru
    _

// kernel: _decoder_stack.21
$region0: #{_decoder_stack.21}
  #allocation0 [shape = 'u32[]', space=smem, size = 0x4, offset = 0x4, fixed_abs, tag = 'smem constant byte address 0x4 - core index']
  #allocation1 [shape = 'u32[144,128]{1,0:T(1,128)}', space=vmem, size = 0x12000, scoped, tag = 'internal scratch']
  %s0 = inlined_call_operand.vmem [shape: f32[16,32], index: 0, kind: input, shape index: {}]
  %s1 = inlined_call_operand.vmem [shape: f32[32,32], index: 1, kind: input, shape index: {}]
  %s2 = inlined_call_operand.vmem [shape: f32[1,32], index: 2, kind: input, shape index: {}]
  %s3 = inlined_call_operand.vmem [shape: f32[16,32], index: 3, kind: output, shape index: {}]
  %s4 = sld [smem:[#allocation0]]
  $region22: #{_decoder_stack.21} parent=0
    _
  %s6 = ssub.s32 1, %s4
  %s7 = scalar_select 0, %s6, %s4
  // Predicated region
  $region2: #{_decoder_stack.21} parent=0 // pred_check
    _
  $region3: #{_decoder_stack.21} parent=0 // pred_check_branch
    %9 = sbr.rel (0) target = $region5
  $region4: #{_decoder_stack.21} parent=0 // pred_region
    _
  $region5: #{_decoder_stack.21} parent=0 // pred_fallthru
    _
  // Predicated region
  $region6: #{_decoder_stack.21} parent=0 // pred_check
    _
  $region7: #{_decoder_stack.21} parent=0 // pred_check_branch
    %11 = sbr.rel (0) target = $region9
  $region8: #{_decoder_stack.21} parent=0 // pred_region
    _
  $region9: #{_decoder_stack.21} parent=0 // pred_fallthru
    _
  // Predicated region
  $region10: #{_decoder_stack.21} parent=0 // pred_check
    _
  $region11: #{_decoder_stack.21} parent=0 // pred_check_branch
    %13 = sbr.rel (0) target = $region13
  $region12: #{_decoder_stack.21} parent=0 // pred_region
    _
  $region13: #{_decoder_stack.21} parent=0 // pred_fallthru
    _
  %v15 = vld [vmem:[%s0] sm:$0xff]
  %v16 = vld [vmem:[%s0 + $0x8] sm:$0xff]
  %v17 = vpack.c.bf16 %v16, %v15
  %v18 = vld [vmem:[%s1] sm:$0xff]
  %v19 = vld [vmem:[%s1 + $0x8] sm:$0xff]
  %v20 = vld [vmem:[%s1 + $0x10] sm:$0xff]
  %v21 = vld [vmem:[%s1 + $0x18] sm:$0xff]
  %v22 = vpack.c.bf16 %v19, %v18
  %v23 = vpack.c.bf16 %v21, %v20
  %v24 = vld [vmem:[%s2] sm:$0x1]
  %v26 = vlaneseq
  %v27 = vshrl.u32 %v26, 7
  %v28 = vsub.s32 0, %v27
  %v29 = vrot.slane %v24, %v28
  %vm31 = vcmask 261120
  %v33 = vsel %vm31, %v17, 0
  %35 = vmatprep.subr.bf16.mxu0 0
  %36 = vmatpush1.bf16.msra.mxu0 %v22
  %37 = vmatprep.subr.bf16.mxu0 0
  %38 = vmatpush1.bf16.msra.mxu0 %v23
  %39 = vmatprep.subr.bf16.mxu0 0
  %40 = vmatpush1.bf16.msra.mxu0 0
  %41 = vmatprep.subr.bf16.mxu0 0
  %42 = vmatpush1.bf16.msra.mxu0 0
  %43 = vmatprep.subr.bf16.mxu0 0
  %44 = vmatpush1.bf16.msra.mxu0 0
  %45 = vmatprep.subr.bf16.mxu0 0
  %46 = vmatpush1.bf16.msra.mxu0 0
  %47 = vmatprep.subr.bf16.mxu0 0
  %48 = vmatpush1.bf16.msra.mxu0 0
  %49 = vmatprep.subr.bf16.mxu0 0
  %50 = vmatpush1.bf16.msra.mxu0 0
  %51 = vmatprep.subr.bf16.mxu0 0
  %52 = vmatpush1.bf16.msra.mxu0 0
  %53 = vmatprep.subr.bf16.mxu0 0
  %54 = vmatpush1.bf16.msra.mxu0 0
  %55 = vmatprep.subr.bf16.mxu0 0
  %56 = vmatpush1.bf16.msra.mxu0 0
  %57 = vmatprep.subr.bf16.mxu0 0
  %58 = vmatpush1.bf16.msra.mxu0 0
  %59 = vmatprep.subr.bf16.mxu0 0
  %60 = vmatpush1.bf16.msra.mxu0 0
  %61 = vmatprep.subr.bf16.mxu0 0
  %62 = vmatpush1.bf16.msra.mxu0 0
  %63 = vmatprep.subr.bf16.mxu0 0
  %64 = vmatpush1.bf16.msra.mxu0 0
  %65 = vmatprep.subr.bf16.mxu0 0
  %66 = vmatpush1.bf16.msra.mxu0 0
  %67 = vmatprep.mubr.bf16.mxu0 0
  %68 = vmatmul.mubr.bf16.gmra.mrb[0].mxu0 %v33
  %v69 = vpop.f32.mrb[0].mxu0
  %v70 = vadd.f32 %v29, %v69
  %v71 = vpop.f32.mrb[0].mxu0
  %v72 = vpop.f32.mrb[0].mxu0
  %v73 = vadd.f32 %v29, %v72
  %v74 = vpop.f32.mrb[0].mxu0
  %75 = vdwg.mxu0
  %76 = vst.msk [vmem:[%s3] sm:$0xff] %vm31, %v70
  %77 = vst.msk [vmem:[%s3 + $0x8] sm:$0xff] %vm31, %v73
  // Predicated region
  $region14: #{_decoder_stack.21} parent=0 // pred_check
    _
  $region15: #{_decoder_stack.21} parent=0 // pred_check_branch
    %79 = sbr.rel (0) target = $region17
  $region16: #{_decoder_stack.21} parent=0 // pred_region
    _
  $region17: #{_decoder_stack.21} parent=0 // pred_fallthru
    _
  // Predicated region
  $region18: #{_decoder_stack.21} parent=0 // pred_check
    _
  $region19: #{_decoder_stack.21} parent=0 // pred_check_branch
    %81 = sbr.rel (0) target = $region21
  $region20: #{_decoder_stack.21} parent=0 // pred_region
    _
  $region21: #{_decoder_stack.21} parent=0 // pred_fallthru
    _

// kernel: _decoder_stack.22
$region0: #{_decoder_stack.22}
  #allocation0 [shape = 'u32[]', space=smem, size = 0x4, offset = 0x4, fixed_abs, tag = 'smem constant byte address 0x4 - core index']
  #allocation1 [shape = 'u32[144,128]{1,0:T(1,128)}', space=vmem, size = 0x12000, scoped, tag = 'internal scratch']
  %s0 = inlined_call_operand.vmem [shape: f32[16,32], index: 0, kind: input, shape index: {}]
  %s1 = inlined_call_operand.vmem [shape: f32[32,64], index: 1, kind: input, shape index: {}]
  %s2 = inlined_call_operand.vmem [shape: f32[1,64], index: 2, kind: input, shape index: {}]
  %s3 = inlined_call_operand.vmem [shape: f32[16,32], index: 3, kind: output, shape index: {0}]
  %s4 = inlined_call_operand.vmem [shape: f32[16,32], index: 4, kind: output, shape index: {1}]
  %5 = xla_tuple %s3, %s4
  %s6 = sld [smem:[#allocation0]]
  $region30: #{_decoder_stack.22} parent=0
    _
  %s8 = ssub.s32 1, %s6
  %s9 = scalar_select 0, %s8, %s6
  // Predicated region
  $region2: #{_decoder_stack.22} parent=0 // pred_check
    _
  $region3: #{_decoder_stack.22} parent=0 // pred_check_branch
    %11 = sbr.rel (0) target = $region5
  $region4: #{_decoder_stack.22} parent=0 // pred_region
    _
  $region5: #{_decoder_stack.22} parent=0 // pred_fallthru
    _
  // Predicated region
  $region6: #{_decoder_stack.22} parent=0 // pred_check
    _
  $region7: #{_decoder_stack.22} parent=0 // pred_check_branch
    %13 = sbr.rel (0) target = $region9
  $region8: #{_decoder_stack.22} parent=0 // pred_region
    _
  $region9: #{_decoder_stack.22} parent=0 // pred_fallthru
    _
  // Predicated region
  $region10: #{_decoder_stack.22} parent=0 // pred_check
    _
  $region11: #{_decoder_stack.22} parent=0 // pred_check_branch
    %15 = sbr.rel (0) target = $region13
  $region12: #{_decoder_stack.22} parent=0 // pred_region
    _
  $region13: #{_decoder_stack.22} parent=0 // pred_fallthru
    _
  %v17 = vld [vmem:[%s0] sm:$0xff]
  %v18 = vld [vmem:[%s0 + $0x8] sm:$0xff]
  %v19 = vpack.c.bf16 %v18, %v17
  %v20 = vld [vmem:[%s1] sm:$0xff]
  %v21 = vld [vmem:[%s1 + $0x8] sm:$0xff]
  %v22 = vld [vmem:[%s1 + $0x10] sm:$0xff]
  %v23 = vld [vmem:[%s1 + $0x18] sm:$0xff]
  %v24 = vpack.c.bf16 %v21, %v20
  %v25 = vpack.c.bf16 %v23, %v22
  %v26 = vld [vmem:[%s2] sm:$0x1]
  %v28 = vlaneseq
  %v29 = vshrl.u32 %v28, 7
  %v30 = vsub.s32 0, %v29
  %v31 = vrot.slane %v26, %v30
  %vm33 = vcmask 261120
  %v35 = vsel %vm33, %v19, 0
  %37 = vmatprep.subr.bf16.mxu0 0
  %38 = vmatpush1.bf16.msra.mxu0 %v24
  %39 = vmatprep.subr.bf16.mxu0 0
  %40 = vmatpush1.bf16.msra.mxu0 %v25
  %41 = vmatprep.subr.bf16.mxu0 0
  %42 = vmatpush1.bf16.msra.mxu0 0
  %43 = vmatprep.subr.bf16.mxu0 0
  %44 = vmatpush1.bf16.msra.mxu0 0
  %45 = vmatprep.subr.bf16.mxu0 0
  %46 = vmatpush1.bf16.msra.mxu0 0
  %47 = vmatprep.subr.bf16.mxu0 0
  %48 = vmatpush1.bf16.msra.mxu0 0
  %49 = vmatprep.subr.bf16.mxu0 0
  %50 = vmatpush1.bf16.msra.mxu0 0
  %51 = vmatprep.subr.bf16.mxu0 0
  %52 = vmatpush1.bf16.msra.mxu0 0
  %53 = vmatprep.subr.bf16.mxu0 0
  %54 = vmatpush1.bf16.msra.mxu0 0
  %55 = vmatprep.subr.bf16.mxu0 0
  %56 = vmatpush1.bf16.msra.mxu0 0
  %57 = vmatprep.subr.bf16.mxu0 0
  %58 = vmatpush1.bf16.msra.mxu0 0
  %59 = vmatprep.subr.bf16.mxu0 0
  %60 = vmatpush1.bf16.msra.mxu0 0
  %61 = vmatprep.subr.bf16.mxu0 0
  %62 = vmatpush1.bf16.msra.mxu0 0
  %63 = vmatprep.subr.bf16.mxu0 0
  %64 = vmatpush1.bf16.msra.mxu0 0
  %65 = vmatprep.subr.bf16.mxu0 0
  %66 = vmatpush1.bf16.msra.mxu0 0
  %67 = vmatprep.subr.bf16.mxu0 0
  %68 = vmatpush1.bf16.msra.mxu0 0
  %69 = vmatprep.mubr.bf16.mxu0 0
  %70 = vmatmul.mubr.bf16.gmra.mrb[0].mxu0 %v35
  %v71 = vpop.f32.mrb[0].mxu0
  %v72 = vadd.f32 %v31, %v71
  %v73 = vpop.f32.mrb[0].mxu0
  %v74 = vpop.f32.mrb[0].mxu0
  %v75 = vadd.f32 %v31, %v74
  %v76 = vpop.f32.mrb[0].mxu0
  %77 = vdwg.mxu0
  %78 = vst.msk [vmem:[%s3] sm:$0xff] %vm33, %v72
  %79 = vst.msk [vmem:[%s3 + $0x8] sm:$0xff] %vm33, %v75
  %82 = vrot.lane.b32.xlu0 %v72, 96
  %v83 = vpop.permute.xlu0 %82
  %84 = vrot.lane.b32.xlu0 %v75, 96
  %v85 = vpop.permute.xlu0 %84
  %88 = vst.msk [vmem:[%s4] sm:$0xff] %vm33, %v83
  %89 = vst.msk [vmem:[%s4 + $0x8] sm:$0xff] %vm33, %v85
  // Predicated region
  $region14: #{_decoder_stack.22} parent=0 // pred_check
    _
  $region15: #{_decoder_stack.22} parent=0 // pred_check_branch
    %91 = sbr.rel (0) target = $region17
  $region16: #{_decoder_stack.22} parent=0 // pred_region
    _
  $region17: #{_decoder_stack.22} parent=0 // pred_fallthru
    _
  // Predicated region
  $region18: #{_decoder_stack.22} parent=0 // pred_check
    _
  $region19: #{_decoder_stack.22} parent=0 // pred_check_branch
    %93 = sbr.rel (0) target = $region21
  $region20: #{_decoder_stack.22} parent=0 // pred_region
    _
  $region21: #{_decoder_stack.22} parent=0 // pred_fallthru
    _
  // Predicated region
  $region22: #{_decoder_stack.22} parent=0 // pred_check
    _
  $region23: #{_decoder_stack.22} parent=0 // pred_check_branch
    %95 = sbr.rel (0) target = $region25
  $region24: #{_decoder_stack.22} parent=0 // pred_region
    _
  $region25: #{_decoder_stack.22} parent=0 // pred_fallthru
    _
  // Predicated region
  $region26: #{_decoder_stack.22} parent=0 // pred_check
    _
  $region27: #{_decoder_stack.22} parent=0 // pred_check_branch
    %97 = sbr.rel (0) target = $region29
  $region28: #{_decoder_stack.22} parent=0 // pred_region
    _
  $region29: #{_decoder_stack.22} parent=0 // pred_fallthru
    _

// kernel: _decoder_stack.25
$region0: #{_decoder_stack.25}
  #allocation0 [shape = 'u32[]', space=smem, size = 0x4, offset = 0x4, fixed_abs, tag = 'smem constant byte address 0x4 - core index']
  #allocation1 [shape = 'u32[144,128]{1,0:T(1,128)}', space=vmem, size = 0x12000, scoped, tag = 'internal scratch']
  %s0 = inlined_call_operand.vmem [shape: f32[16,32], index: 0, kind: input, shape index: {}]
  %s1 = inlined_call_operand.vmem [shape: f32[32,64], index: 1, kind: input, shape index: {}]
  %s2 = inlined_call_operand.vmem [shape: f32[1,64], index: 2, kind: input, shape index: {}]
  %s3 = inlined_call_operand.vmem [shape: f32[16,64], index: 3, kind: output, shape index: {}]
  %s4 = sld [smem:[#allocation0]]
  $region22: #{_decoder_stack.25} parent=0
    _
  %s6 = ssub.s32 1, %s4
  %s7 = scalar_select 0, %s6, %s4
  // Predicated region
  $region2: #{_decoder_stack.25} parent=0 // pred_check
    _
  $region3: #{_decoder_stack.25} parent=0 // pred_check_branch
    %9 = sbr.rel (0) target = $region5
  $region4: #{_decoder_stack.25} parent=0 // pred_region
    _
  $region5: #{_decoder_stack.25} parent=0 // pred_fallthru
    _
  // Predicated region
  $region6: #{_decoder_stack.25} parent=0 // pred_check
    _
  $region7: #{_decoder_stack.25} parent=0 // pred_check_branch
    %11 = sbr.rel (0) target = $region9
  $region8: #{_decoder_stack.25} parent=0 // pred_region
    _
  $region9: #{_decoder_stack.25} parent=0 // pred_fallthru
    _
  // Predicated region
  $region10: #{_decoder_stack.25} parent=0 // pred_check
    _
  $region11: #{_decoder_stack.25} parent=0 // pred_check_branch
    %13 = sbr.rel (0) target = $region13
  $region12: #{_decoder_stack.25} parent=0 // pred_region
    _
  $region13: #{_decoder_stack.25} parent=0 // pred_fallthru
    _
  %v15 = vld [vmem:[%s0] sm:$0xff]
  %v16 = vld [vmem:[%s0 + $0x8] sm:$0xff]
  %v17 = vpack.c.bf16 %v16, %v15
  %v18 = vld [vmem:[%s1] sm:$0xff]
  %v19 = vld [vmem:[%s1 + $0x8] sm:$0xff]
  %v20 = vld [vmem:[%s1 + $0x10] sm:$0xff]
  %v21 = vld [vmem:[%s1 + $0x18] sm:$0xff]
  %v22 = vpack.c.bf16 %v19, %v18
  %v23 = vpack.c.bf16 %v21, %v20
  %v24 = vld [vmem:[%s2] sm:$0x1]
  %v26 = vlaneseq
  %v27 = vshrl.u32 %v26, 7
  %v28 = vsub.s32 0, %v27
  %v29 = vrot.slane %v24, %v28
  %vm31 = vcmask 261120
  %v33 = vsel %vm31, %v17, 0
  %35 = vmatprep.subr.bf16.mxu0 0
  %36 = vmatpush1.bf16.msra.mxu0 %v22
  %37 = vmatprep.subr.bf16.mxu0 0
  %38 = vmatpush1.bf16.msra.mxu0 %v23
  %39 = vmatprep.subr.bf16.mxu0 0
  %40 = vmatpush1.bf16.msra.mxu0 0
  %41 = vmatprep.subr.bf16.mxu0 0
  %42 = vmatpush1.bf16.msra.mxu0 0
  %43 = vmatprep.subr.bf16.mxu0 0
  %44 = vmatpush1.bf16.msra.mxu0 0
  %45 = vmatprep.subr.bf16.mxu0 0
  %46 = vmatpush1.bf16.msra.mxu0 0
  %47 = vmatprep.subr.bf16.mxu0 0
  %48 = vmatpush1.bf16.msra.mxu0 0
  %49 = vmatprep.subr.bf16.mxu0 0
  %50 = vmatpush1.bf16.msra.mxu0 0
  %51 = vmatprep.subr.bf16.mxu0 0
  %52 = vmatpush1.bf16.msra.mxu0 0
  %53 = vmatprep.subr.bf16.mxu0 0
  %54 = vmatpush1.bf16.msra.mxu0 0
  %55 = vmatprep.subr.bf16.mxu0 0
  %56 = vmatpush1.bf16.msra.mxu0 0
  %57 = vmatprep.subr.bf16.mxu0 0
  %58 = vmatpush1.bf16.msra.mxu0 0
  %59 = vmatprep.subr.bf16.mxu0 0
  %60 = vmatpush1.bf16.msra.mxu0 0
  %61 = vmatprep.subr.bf16.mxu0 0
  %62 = vmatpush1.bf16.msra.mxu0 0
  %63 = vmatprep.subr.bf16.mxu0 0
  %64 = vmatpush1.bf16.msra.mxu0 0
  %65 = vmatprep.subr.bf16.mxu0 0
  %66 = vmatpush1.bf16.msra.mxu0 0
  %67 = vmatprep.mubr.bf16.mxu0 0
  %68 = vmatmul.mubr.bf16.gmra.mrb[0].mxu0 %v33
  %v69 = vpop.f32.mrb[0].mxu0
  %v70 = vadd.f32 %v29, %v69
  %v71 = vpop.f32.mrb[0].mxu0
  %v72 = vpop.f32.mrb[0].mxu0
  %v73 = vadd.f32 %v29, %v72
  %v74 = vpop.f32.mrb[0].mxu0
  %75 = vdwg.mxu0
  %v76 = vmax.f32 %v70, 0.0
  %v77 = vmax.f32 %v73, 0.0
  %vm78 = vcmask 523264
  %79 = vst.msk [vmem:[%s3] sm:$0xff] %vm78, %v76
  %80 = vst.msk [vmem:[%s3 + $0x8] sm:$0xff] %vm78, %v77
  // Predicated region
  $region14: #{_decoder_stack.25} parent=0 // pred_check
    _
  $region15: #{_decoder_stack.25} parent=0 // pred_check_branch
    %82 = sbr.rel (0) target = $region17
  $region16: #{_decoder_stack.25} parent=0 // pred_region
    _
  $region17: #{_decoder_stack.25} parent=0 // pred_fallthru
    _
  // Predicated region
  $region18: #{_decoder_stack.25} parent=0 // pred_check
    _
  $region19: #{_decoder_stack.25} parent=0 // pred_check_branch
    %84 = sbr.rel (0) target = $region21
  $region20: #{_decoder_stack.25} parent=0 // pred_region
    _
  $region21: #{_decoder_stack.25} parent=0 // pred_fallthru
    _

// kernel: _decoder_stack.35
$region0: #{_decoder_stack.35}
  #allocation0 [shape = 'u32[]', space=smem, size = 0x4, offset = 0x4, fixed_abs, tag = 'smem constant byte address 0x4 - core index']
  #allocation1 [shape = 'u32[144,128]{1,0:T(1,128)}', space=vmem, size = 0x12000, scoped, tag = 'internal scratch']
  %s0 = inlined_call_operand.vmem [shape: f32[16,64], index: 0, kind: input, shape index: {}]
  %s1 = inlined_call_operand.vmem [shape: f32[64,32], index: 1, kind: input, shape index: {}]
  %s2 = inlined_call_operand.vmem [shape: f32[1,32], index: 2, kind: input, shape index: {}]
  %s3 = inlined_call_operand.vmem [shape: f32[16,32], index: 3, kind: input, shape index: {}]
  %s4 = inlined_call_operand.vmem [shape: f32[1,32], index: 4, kind: input, shape index: {}]
  %s5 = inlined_call_operand.vmem [shape: f32[1,32], index: 5, kind: input, shape index: {}]
  %s6 = inlined_call_operand.hbm [shape: f32[16,32], index: 6, kind: output, shape index: {}]
  %s7 = sld [smem:[#allocation0]]
  $region34: #{_decoder_stack.35} parent=0
    _
  %s9 = ssub.s32 1, %s7
  %s10 = scalar_select 0, %s9, %s7
  $region1: #{_decoder_stack.35} parent=0
    #allocation2 [shape = 'u8[8192]{0}', space=vmem, size = 0x2000, scoped, tag = 'output window, operand 0, single buffered']
    #allocation3 [shape = 's32[1]{0}', space=sflag, size = 0x4, scoped, tag = 'scoped memory for _decoder_stack.35']
    %11 = vsyncpa [#allocation3], 0
    // Predicated region
    $region2: #{_decoder_stack.35} parent=1 // pred_check
      _
    $region3: #{_decoder_stack.35} parent=1 // pred_check_branch
      %13 = sbr.rel (0) target = $region5
    $region4: #{_decoder_stack.35} parent=1 // pred_region
      _
    $region5: #{_decoder_stack.35} parent=1 // pred_fallthru
      _
    // Predicated region
    $region6: #{_decoder_stack.35} parent=1 // pred_check
      _
    $region7: #{_decoder_stack.35} parent=1 // pred_check_branch
      %15 = sbr.rel (0) target = $region9
    $region8: #{_decoder_stack.35} parent=1 // pred_region
      _
    $region9: #{_decoder_stack.35} parent=1 // pred_fallthru
      _
    // Predicated region
    $region10: #{_decoder_stack.35} parent=1 // pred_check
      _
    $region11: #{_decoder_stack.35} parent=1 // pred_check_branch
      %17 = sbr.rel (0) target = $region13
    $region12: #{_decoder_stack.35} parent=1 // pred_region
      _
    $region13: #{_decoder_stack.35} parent=1 // pred_fallthru
      _
    // Predicated region
    $region14: #{_decoder_stack.35} parent=1 // pred_check
      _
    $region15: #{_decoder_stack.35} parent=1 // pred_check_branch
      %19 = sbr.rel (0) target = $region17
    $region16: #{_decoder_stack.35} parent=1 // pred_region
      _
    $region17: #{_decoder_stack.35} parent=1 // pred_fallthru
      _
    // Predicated region
    $region18: #{_decoder_stack.35} parent=1 // pred_check
      _
    $region19: #{_decoder_stack.35} parent=1 // pred_check_branch
      %21 = sbr.rel (0) target = $region21
    $region20: #{_decoder_stack.35} parent=1 // pred_region
      _
    $region21: #{_decoder_stack.35} parent=1 // pred_fallthru
      _
    // Predicated region
    $region22: #{_decoder_stack.35} parent=1 // pred_check
      _
    $region23: #{_decoder_stack.35} parent=1 // pred_check_branch
      %23 = sbr.rel (0) target = $region25
    $region24: #{_decoder_stack.35} parent=1 // pred_region
      _
    $region25: #{_decoder_stack.35} parent=1 // pred_fallthru
      _
    %v25 = vld [vmem:[%s0] sm:$0xff]
    %v26 = vld [vmem:[%s0 + $0x8] sm:$0xff]
    %v27 = vpack.c.bf16 %v26, %v25
    %v28 = vld [vmem:[%s1] sm:$0xff]
    %v29 = vld [vmem:[%s1 + $0x8] sm:$0xff]
    %v30 = vld [vmem:[%s1 + $0x10] sm:$0xff]
    %v31 = vld [vmem:[%s1 + $0x18] sm:$0xff]
    %v32 = vld [vmem:[%s1 + $0x20] sm:$0xff]
    %v33 = vld [vmem:[%s1 + $0x28] sm:$0xff]
    %v34 = vld [vmem:[%s1 + $0x30] sm:$0xff]
    %v35 = vld [vmem:[%s1 + $0x38] sm:$0xff]
    %v36 = vpack.c.bf16 %v29, %v28
    %v37 = vpack.c.bf16 %v31, %v30
    %v38 = vpack.c.bf16 %v33, %v32
    %v39 = vpack.c.bf16 %v35, %v34
    %v40 = vld [vmem:[%s2] sm:$0x1]
    %v42 = vlaneseq
    %v43 = vshrl.u32 %v42, 7
    %v44 = vsub.s32 0, %v43
    %v45 = vrot.slane %v40, %v44
    %vm47 = vcmask 523264
    %v49 = vsel %vm47, %v27, 0
    %51 = vmatprep.subr.bf16.mxu0 0
    %52 = vmatpush1.bf16.msra.mxu0 %v36
    %53 = vmatprep.subr.bf16.mxu0 0
    %54 = vmatpush1.bf16.msra.mxu0 %v37
    %55 = vmatprep.subr.bf16.mxu0 0
    %56 = vmatpush1.bf16.msra.mxu0 %v38
    %57 = vmatprep.subr.bf16.mxu0 0
    %58 = vmatpush1.bf16.msra.mxu0 %v39
    %59 = vmatprep.subr.bf16.mxu0 0
    %60 = vmatpush1.bf16.msra.mxu0 0
    %61 = vmatprep.subr.bf16.mxu0 0
    %62 = vmatpush1.bf16.msra.mxu0 0
    %63 = vmatprep.subr.bf16.mxu0 0
    %64 = vmatpush1.bf16.msra.mxu0 0
    %65 = vmatprep.subr.bf16.mxu0 0
    %66 = vmatpush1.bf16.msra.mxu0 0
    %67 = vmatprep.subr.bf16.mxu0 0
    %68 = vmatpush1.bf16.msra.mxu0 0
    %69 = vmatprep.subr.bf16.mxu0 0
    %70 = vmatpush1.bf16.msra.mxu0 0
    %71 = vmatprep.subr.bf16.mxu0 0
    %72 = vmatpush1.bf16.msra.mxu0 0
    %73 = vmatprep.subr.bf16.mxu0 0
    %74 = vmatpush1.bf16.msra.mxu0 0
    %75 = vmatprep.subr.bf16.mxu0 0
    %76 = vmatpush1.bf16.msra.mxu0 0
    %77 = vmatprep.subr.bf16.mxu0 0
    %78 = vmatpush1.bf16.msra.mxu0 0
    %79 = vmatprep.subr.bf16.mxu0 0
    %80 = vmatpush1.bf16.msra.mxu0 0
    %81 = vmatprep.subr.bf16.mxu0 0
    %82 = vmatpush1.bf16.msra.mxu0 0
    %83 = vmatprep.mubr.bf16.mxu0 0
    %84 = vmatmul.mubr.bf16.gmra.mrb[0].mxu0 %v49
    %v85 = vpop.f32.mrb[0].mxu0
    %v86 = vadd.f32 %v45, %v85
    %v87 = vpop.f32.mrb[0].mxu0
    %v88 = vpop.f32.mrb[0].mxu0
    %v89 = vadd.f32 %v45, %v88
    %v90 = vpop.f32.mrb[0].mxu0
    %91 = vdwg.mxu0
    %v92 = vld [vmem:[%s3] sm:$0xff]
    %v93 = vld [vmem:[%s3 + $0x8] sm:$0xff]
    %v94 = vadd.f32 %v86, %v92
    %v95 = vadd.f32 %v89, %v93
    %vm96 = vcmask 261120
    %v97 = vsel %vm96, %v94, 0.0
    %98 = vadd.xlane.f32.xlu0 %v97
    %v99 = vpop.xlane.xlu0 %98
    %v100 = vsel %vm96, %v95, 0.0
    %101 = vadd.xlane.f32.xlu0 %v100
    %v102 = vpop.xlane.xlu0 %101
    %v103 = vrcp.pop 32.0
    %v104 = vmul.f32 %v99, %v103
    %v105 = vmul.f32 %v102, %v103
    %v106 = vsub.f32 %v94, %v104
    %v107 = vsub.f32 %v95, %v105
    %v108 = vmul.f32 %v106, %v106
    %v109 = vmul.f32 %v107, %v107
    %v110 = vsel %vm96, %v108, 0.0
    %111 = vadd.xlane.f32.xlu0 %v110
    %v112 = vpop.xlane.xlu0 %111
    %v113 = vsel %vm96, %v109, 0.0
    %114 = vadd.xlane.f32.xlu0 %v113
    %v115 = vpop.xlane.xlu0 %114
    %v116 = vmul.f32 %v112, %v103
    %v117 = vmul.f32 %v115, %v103
    %v118 = vadd.f32 %v116, 1e-05
    %v119 = vadd.f32 %v117, 1e-05
    %v120 = vrsqrt.pop %v118
    %v121 = vrsqrt.pop %v119
    %v122 = vmul.f32 %v106, %v120
    %v123 = vmul.f32 %v107, %v121
    %v124 = vld [vmem:[%s4] sm:$0x1]
    %v126 = vlaneseq
    %v127 = vshrl.u32 %v126, 7
    %v128 = vsub.s32 0, %v127
    %v129 = vrot.slane %v124, %v128
    %v131 = vmul.f32 %v122, %v129
    %v132 = vmul.f32 %v123, %v129
    %v133 = vld [vmem:[%s5] sm:$0x1]
    %v135 = vlaneseq
    %v136 = vshrl.u32 %v135, 7
    %v137 = vsub.s32 0, %v136
    %v138 = vrot.slane %v133, %v137
    %v140 = vadd.f32 %v131, %v138
    %v141 = vadd.f32 %v132, %v138
    %142 = vst.msk [vmem:[#allocation2] sm:$0xff] %vm96, %v140
    %143 = vst.msk [vmem:[#allocation2 + $0x8] sm:$0xff] %vm96, %v141
    // Predicated region
    $region26: #{_decoder_stack.35} parent=1 // pred_check
      _
    $region27: #{_decoder_stack.35} parent=1 // pred_check_branch
      %145 = sbr.rel (0) target = $region29
    $region28: #{_decoder_stack.35} parent=1 // pred_region
      %s147 = ssub.s32 256, 256
      %148 = vsyncadd [#allocation3], %s147
      %s149 = sshll.u32 [#allocation2], 4
      %s150 = int_to_ptr.vmem [resolvable:$true] %s149
      %155 = dma.vmem_to_hbm [thread:$0]  %s150, 256, %s6, [#allocation3], 128, 128, 8
    $region29: #{_decoder_stack.35} parent=1 // pred_fallthru
      _
    // Predicated region
    $region30: #{_decoder_stack.35} parent=1 // pred_check
      _
    $region31: #{_decoder_stack.35} parent=1 // pred_check_branch
      %157 = sbr.rel (0) target = $region33
    $region32: #{_decoder_stack.35} parent=1 // pred_region
      %158 = dma.done [#allocation3], 256
    $region33: #{_decoder_stack.35} parent=1 // pred_fallthru
      _
    %159 = vsyncpa [#allocation3], 1

// kernel: _decoder_stack.26
$region0: #{_decoder_stack.26}
  #allocation0 [shape = 'u32[]', space=smem, size = 0x4, offset = 0x4, fixed_abs, tag = 'smem constant byte address 0x4 - core index']
  #allocation1 [shape = 'u32[144,128]{1,0:T(1,128)}', space=vmem, size = 0x12000, scoped, tag = 'internal scratch']
  %s0 = inlined_call_operand.vmem [shape: f32[16,64], index: 0, kind: input, shape index: {}]
  %s1 = inlined_call_operand.vmem [shape: f32[64,32], index: 1, kind: input, shape index: {}]
  %s2 = inlined_call_operand.vmem [shape: f32[1,32], index: 2, kind: input, shape index: {}]
  %s3 = inlined_call_operand.vmem [shape: f32[16,32], index: 3, kind: input, shape index: {}]
  %s4 = inlined_call_operand.vmem [shape: f32[1,32], index: 4, kind: input, shape index: {}]
  %s5 = inlined_call_operand.vmem [shape: f32[1,32], index: 5, kind: input, shape index: {}]
  %s6 = inlined_call_operand.vmem [shape: f32[16,32], index: 6, kind: output, shape index: {}]
  %s7 = sld [smem:[#allocation0]]
  $region34: #{_decoder_stack.26} parent=0
    _
  %s9 = ssub.s32 1, %s7
  %s10 = scalar_select 0, %s9, %s7
  // Predicated region
  $region2: #{_decoder_stack.26} parent=0 // pred_check
    _
  $region3: #{_decoder_stack.26} parent=0 // pred_check_branch
    %12 = sbr.rel (0) target = $region5
  $region4: #{_decoder_stack.26} parent=0 // pred_region
    _
  $region5: #{_decoder_stack.26} parent=0 // pred_fallthru
    _
  // Predicated region
  $region6: #{_decoder_stack.26} parent=0 // pred_check
    _
  $region7: #{_decoder_stack.26} parent=0 // pred_check_branch
    %14 = sbr.rel (0) target = $region9
  $region8: #{_decoder_stack.26} parent=0 // pred_region
    _
  $region9: #{_decoder_stack.26} parent=0 // pred_fallthru
    _
  // Predicated region
  $region10: #{_decoder_stack.26} parent=0 // pred_check
    _
  $region11: #{_decoder_stack.26} parent=0 // pred_check_branch
    %16 = sbr.rel (0) target = $region13
  $region12: #{_decoder_stack.26} parent=0 // pred_region
    _
  $region13: #{_decoder_stack.26} parent=0 // pred_fallthru
    _
  // Predicated region
  $region14: #{_decoder_stack.26} parent=0 // pred_check
    _
  $region15: #{_decoder_stack.26} parent=0 // pred_check_branch
    %18 = sbr.rel (0) target = $region17
  $region16: #{_decoder_stack.26} parent=0 // pred_region
    _
  $region17: #{_decoder_stack.26} parent=0 // pred_fallthru
    _
  // Predicated region
  $region18: #{_decoder_stack.26} parent=0 // pred_check
    _
  $region19: #{_decoder_stack.26} parent=0 // pred_check_branch
    %20 = sbr.rel (0) target = $region21
  $region20: #{_decoder_stack.26} parent=0 // pred_region
    _
  $region21: #{_decoder_stack.26} parent=0 // pred_fallthru
    _
  // Predicated region
  $region22: #{_decoder_stack.26} parent=0 // pred_check
    _
  $region23: #{_decoder_stack.26} parent=0 // pred_check_branch
    %22 = sbr.rel (0) target = $region25
  $region24: #{_decoder_stack.26} parent=0 // pred_region
    _
  $region25: #{_decoder_stack.26} parent=0 // pred_fallthru
    _
  %v24 = vld [vmem:[%s0] sm:$0xff]
  %v25 = vld [vmem:[%s0 + $0x8] sm:$0xff]
  %v26 = vpack.c.bf16 %v25, %v24
  %v27 = vld [vmem:[%s1] sm:$0xff]
  %v28 = vld [vmem:[%s1 + $0x8] sm:$0xff]
  %v29 = vld [vmem:[%s1 + $0x10] sm:$0xff]
  %v30 = vld [vmem:[%s1 + $0x18] sm:$0xff]
  %v31 = vld [vmem:[%s1 + $0x20] sm:$0xff]
  %v32 = vld [vmem:[%s1 + $0x28] sm:$0xff]
  %v33 = vld [vmem:[%s1 + $0x30] sm:$0xff]
  %v34 = vld [vmem:[%s1 + $0x38] sm:$0xff]
  %v35 = vpack.c.bf16 %v28, %v27
  %v36 = vpack.c.bf16 %v30, %v29
  %v37 = vpack.c.bf16 %v32, %v31
  %v38 = vpack.c.bf16 %v34, %v33
  %v39 = vld [vmem:[%s2] sm:$0x1]
  %v41 = vlaneseq
  %v42 = vshrl.u32 %v41, 7
  %v43 = vsub.s32 0, %v42
  %v44 = vrot.slane %v39, %v43
  %vm46 = vcmask 523264
  %v48 = vsel %vm46, %v26, 0
  %50 = vmatprep.subr.bf16.mxu0 0
  %51 = vmatpush1.bf16.msra.mxu0 %v35
  %52 = vmatprep.subr.bf16.mxu0 0
  %53 = vmatpush1.bf16.msra.mxu0 %v36
  %54 = vmatprep.subr.bf16.mxu0 0
  %55 = vmatpush1.bf16.msra.mxu0 %v37
  %56 = vmatprep.subr.bf16.mxu0 0
  %57 = vmatpush1.bf16.msra.mxu0 %v38
  %58 = vmatprep.subr.bf16.mxu0 0
  %59 = vmatpush1.bf16.msra.mxu0 0
  %60 = vmatprep.subr.bf16.mxu0 0
  %61 = vmatpush1.bf16.msra.mxu0 0
  %62 = vmatprep.subr.bf16.mxu0 0
  %63 = vmatpush1.bf16.msra.mxu0 0
  %64 = vmatprep.subr.bf16.mxu0 0
  %65 = vmatpush1.bf16.msra.mxu0 0
  %66 = vmatprep.subr.bf16.mxu0 0
  %67 = vmatpush1.bf16.msra.mxu0 0
  %68 = vmatprep.subr.bf16.mxu0 0
  %69 = vmatpush1.bf16.msra.mxu0 0
  %70 = vmatprep.subr.bf16.mxu0 0
  %71 = vmatpush1.bf16.msra.mxu0 0
  %72 = vmatprep.subr.bf16.mxu0 0
  %73 = vmatpush1.bf16.msra.mxu0 0
  %74 = vmatprep.subr.bf16.mxu0 0
  %75 = vmatpush1.bf16.msra.mxu0 0
  %76 = vmatprep.subr.bf16.mxu0 0
  %77 = vmatpush1.bf16.msra.mxu0 0
  %78 = vmatprep.subr.bf16.mxu0 0
  %79 = vmatpush1.bf16.msra.mxu0 0
  %80 = vmatprep.subr.bf16.mxu0 0
  %81 = vmatpush1.bf16.msra.mxu0 0
  %82 = vmatprep.mubr.bf16.mxu0 0
  %83 = vmatmul.mubr.bf16.gmra.mrb[0].mxu0 %v48
  %v84 = vpop.f32.mrb[0].mxu0
  %v85 = vadd.f32 %v44, %v84
  %v86 = vpop.f32.mrb[0].mxu0
  %v87 = vpop.f32.mrb[0].mxu0
  %v88 = vadd.f32 %v44, %v87
  %v89 = vpop.f32.mrb[0].mxu0
  %90 = vdwg.mxu0
  %v91 = vld [vmem:[%s3] sm:$0xff]
  %v92 = vld [vmem:[%s3 + $0x8] sm:$0xff]
  %v93 = vadd.f32 %v85, %v91
  %v94 = vadd.f32 %v88, %v92
  %vm95 = vcmask 261120
  %v96 = vsel %vm95, %v93, 0.0
  %97 = vadd.xlane.f32.xlu0 %v96
  %v98 = vpop.xlane.xlu0 %97
  %v99 = vsel %vm95, %v94, 0.0
  %100 = vadd.xlane.f32.xlu0 %v99
  %v101 = vpop.xlane.xlu0 %100
  %v102 = vrcp.pop 32.0
  %v103 = vmul.f32 %v98, %v102
  %v104 = vmul.f32 %v101, %v102
  %v105 = vsub.f32 %v93, %v103
  %v106 = vsub.f32 %v94, %v104
  %v107 = vmul.f32 %v105, %v105
  %v108 = vmul.f32 %v106, %v106
  %v109 = vsel %vm95, %v107, 0.0
  %110 = vadd.xlane.f32.xlu0 %v109
  %v111 = vpop.xlane.xlu0 %110
  %v112 = vsel %vm95, %v108, 0.0
  %113 = vadd.xlane.f32.xlu0 %v112
  %v114 = vpop.xlane.xlu0 %113
  %v115 = vmul.f32 %v111, %v102
  %v116 = vmul.f32 %v114, %v102
  %v117 = vadd.f32 %v115, 1e-05
  %v118 = vadd.f32 %v116, 1e-05
  %v119 = vrsqrt.pop %v117
  %v120 = vrsqrt.pop %v118
  %v121 = vmul.f32 %v105, %v119
  %v122 = vmul.f32 %v106, %v120
  %v123 = vld [vmem:[%s4] sm:$0x1]
  %v125 = vlaneseq
  %v126 = vshrl.u32 %v125, 7
  %v127 = vsub.s32 0, %v126
  %v128 = vrot.slane %v123, %v127
  %v130 = vmul.f32 %v121, %v128
  %v131 = vmul.f32 %v122, %v128
  %v132 = vld [vmem:[%s5] sm:$0x1]
  %v134 = vlaneseq
  %v135 = vshrl.u32 %v134, 7
  %v136 = vsub.s32 0, %v135
  %v137 = vrot.slane %v132, %v136
  %v139 = vadd.f32 %v130, %v137
  %v140 = vadd.f32 %v131, %v137
  %141 = vst.msk [vmem:[%s6] sm:$0xff] %vm95, %v139
  %142 = vst.msk [vmem:[%s6 + $0x8] sm:$0xff] %vm95, %v140
  // Predicated region
  $region26: #{_decoder_stack.26} parent=0 // pred_check
    _
  $region27: #{_decoder_stack.26} parent=0 // pred_check_branch
    %144 = sbr.rel (0) target = $region29
  $region28: #{_decoder_stack.26} parent=0 // pred_region
    _
  $region29: #{_decoder_stack.26} parent=0 // pred_fallthru
    _
  // Predicated region
  $region30: #{_decoder_stack.26} parent=0 // pred_check
    _
  $region31: #{_decoder_stack.26} parent=0 // pred_check_branch
    %146 = sbr.rel (0) target = $region33
  $region32: #{_decoder_stack.26} parent=0 // pred_region
    _
  $region33: #{_decoder_stack.26} parent=0 // pred_fallthru
    _

</llo_original>
